<compile_context>
chip_gen: v5e
topology: v5e:2x2
jax: 0.10.0
libtpu: 0.0.40
codegen_flags: <defaults>
</compile_context>

<pallas_src>
import math
import functools

import jax
import jax.numpy as jnp
from jax.experimental import pallas as pl
from jax.experimental.pallas import tpu as pltpu

_LN_EPS = 1e-5                     # PyTorch nn.LayerNorm default
_NEG_INF = -1e20                   # matches masked_fill(mask == 0, -1e20)


def _vmem_limit_bytes():
    # Generation-aware scoped-VMEM limit: leave ~25% headroom for compiler
    # scratch.  128 MiB parts (v5e/v6e) -> 96 MiB, 64 MiB parts (v7x) -> 48 MiB.
    try:
        cap = int(pltpu.get_tpu_info().vmem_capacity_bytes)
    except Exception:
        cap = 64 * 1024 * 1024
    return max(32 * 1024 * 1024, (cap * 3) // 4)


_VMEM_LIMIT = _vmem_limit_bytes()
# Bigger row tiles on 128 MiB parts, smaller on v7x's 64 MiB.
_FC_ROW_TILE_CAP = 1024 if _VMEM_LIMIT >= 80 * 1024 * 1024 else 512
_FC_VOCAB_TILE = 2048              # lane-dense (multiple of 128) when tiling


def _compiler_params(dims):
    return pltpu.CompilerParams(dimension_semantics=dims,
                                vmem_limit_bytes=_VMEM_LIMIT)


# ----------------------------------------------------------------------------
# In-kernel helpers
# ----------------------------------------------------------------------------

def _layernorm(y, gamma, beta):
    mean = jnp.mean(y, axis=-1, keepdims=True)
    var = jnp.mean((y - mean) ** 2, axis=-1, keepdims=True)
    return (y - mean) * jax.lax.rsqrt(var + _LN_EPS) * gamma + beta


def _mha(q_lin, k_lin, v_lin, mask_add, wo_ref, ctx_ref, *, heads, head_dim,
         scale):
    """Multi-head attention + output projection.

    q_lin: (Lq, E) f32, k_lin/v_lin: (Lk, E) f32 (already projected),
    mask_add: (Lq, Lk) f32 additive mask (0 = keep, -1e20 = masked),
    wo_ref: (E, E) bf16 output-projection weight,
    ctx_ref: (Lq, E) f32 VMEM scratch collecting per-head contexts.
    Returns (Lq, E) f32 (no bias added here).
    """
    # Cast once, outside the per-head loop (review: hoist redundant VPU casts).
    qb = q_lin.astype(jnp.bfloat16)
    kb = k_lin.astype(jnp.bfloat16)
    vb = v_lin.astype(jnp.bfloat16)
    for h in range(heads):                     # static unroll; heads is small
        lo = h * head_dim
        hi = lo + head_dim
        qh = qb[:, lo:hi]
        kh = kb[:, lo:hi]
        vh = vb[:, lo:hi]
        # q @ k^T without an explicit transpose (contract last dims on MXU)
        s = jax.lax.dot_general(qh, kh, (((1,), (1,)), ((), ())),
                                preferred_element_type=jnp.float32)
        # masked_fill(mask == 0, -1e20) THEN divide by sqrt(head_dim)
        s = (s + mask_add) * scale
        s = s - jnp.max(s, axis=-1, keepdims=True)
        p = jnp.exp(s)
        p = p / jnp.sum(p, axis=-1, keepdims=True)      # exact softmax denom
        # Per-head context written into the (Lq, E) scratch at its column slot
        ctx_ref[:, lo:hi] = jnp.dot(p.astype(jnp.bfloat16), vh,
                                    preferred_element_type=jnp.float32)
    # Single output projection with K = E (one MXU pass amortized over heads).
    return jnp.dot(ctx_ref[...].astype(jnp.bfloat16), wo_ref[...],
                   preferred_element_type=jnp.float32)


# ----------------------------------------------------------------------------
# Pallas kernels
# ----------------------------------------------------------------------------

def _decoder_layer_kernel(x_ref, enc_ref, trg_mask_ref, src_mask_ref,
                          s_wqkv_ref, s_wo_ref, s_bo_ref, n0_g_ref, n0_b_ref,
                          c_wq_ref, c_wkv_ref, c_wo_ref, c_bo_ref,
                          n1_g_ref, n1_b_ref,
                          ff_w1_ref, ff_b1_ref, ff_w2_ref, ff_b2_ref,
                          n2_g_ref, n2_b_ref,
                          o_ref, ctx_ref, *, heads, head_dim, scale, embed):
    """One full DecoderBlock for one batch element, entirely in VMEM."""
    E = embed
    x = x_ref[0]                                                  # (L, E) bf16
    enc = enc_ref[0]                                              # (Lk, E) bf16

    # -------- stage 1: masked self-attention + residual + LayerNorm --------
    # Fused QKV projection: one (L,E) x (E,3E) MXU pass.
    qkv = jnp.dot(x, s_wqkv_ref[...], preferred_element_type=jnp.float32)
    attn = _mha(qkv[:, :E], qkv[:, E:2 * E], qkv[:, 2 * E:],
                trg_mask_ref[...], s_wo_ref, ctx_ref,
                heads=heads, head_dim=head_dim, scale=scale)
    q = _layernorm(attn + s_bo_ref[...] + x.astype(jnp.float32),
                   n0_g_ref[...], n0_b_ref[...])                  # (L, E) f32

    # -------- stage 2: cross-attention (K/V from encoder) + res + LN --------
    q_lin = jnp.dot(q.astype(jnp.bfloat16), c_wq_ref[...],
                    preferred_element_type=jnp.float32)
    kv = jnp.dot(enc, c_wkv_ref[...], preferred_element_type=jnp.float32)
    attn2 = _mha(q_lin, kv[:, :E], kv[:, E:],
                 src_mask_ref[...], c_wo_ref, ctx_ref,
                 heads=heads, head_dim=head_dim, scale=scale)
    h = _layernorm(attn2 + c_bo_ref[...] + q, n1_g_ref[...], n1_b_ref[...])

    # -------- stage 3: feed-forward + residual + LayerNorm --------
    f = jnp.dot(h.astype(jnp.bfloat16), ff_w1_ref[...],
                preferred_element_type=jnp.float32) + ff_b1_ref[...]
    f = jnp.maximum(f, 0.0)
    y = jnp.dot(f.astype(jnp.bfloat16), ff_w2_ref[...],
                preferred_element_type=jnp.float32) + ff_b2_ref[...]
    out = _layernorm(y + h, n2_g_ref[...], n2_b_ref[...])
    o_ref[0] = out.astype(o_ref.dtype)


def _linear_bias_kernel(x_ref, w_ref, b_ref, o_ref):
    o_ref[...] = (jnp.dot(x_ref[...], w_ref[...],
                          preferred_element_type=jnp.float32)
                  + b_ref[...]).astype(o_ref.dtype)


# ----------------------------------------------------------------------------
# pallas_call wrappers
# ----------------------------------------------------------------------------

def decoder_layer(x, enc, trg_mask_add, src_mask_add, lp, heads, head_dim):
    N, L, E = x.shape
    Lk = enc.shape[1]
    F = lp["ff_w1"].shape[1]
    kern = functools.partial(_decoder_layer_kernel, heads=heads,
                             head_dim=head_dim,
                             scale=1.0 / math.sqrt(head_dim), embed=E)
    c2 = lambda b: (0, 0)          # grid-invariant 2-D operands
    # NOTE: weights have constant index_maps so Pallas does not re-DMA them
    # across grid steps; at large E/F, single-buffering them
    # (pipeline_mode=pl.Buffered(1)) or K-tiling would halve their VMEM.
    return pl.pallas_call(
        kern,
        out_shape=jax.ShapeDtypeStruct((N, L, E), jnp.bfloat16),
        grid=(N,),
        in_specs=[
            pl.BlockSpec((1, L, E), lambda b: (b, 0, 0)),     # x (decoder act)
            pl.BlockSpec((1, Lk, E), lambda b: (b, 0, 0)),    # encoder output
            pl.BlockSpec((L, L), c2),                         # trg mask (add)
            pl.BlockSpec((L, Lk), c2),                        # src mask (add)
            pl.BlockSpec((E, 3 * E), c2),                     # self Wqkv
            pl.BlockSpec((E, E), c2),                         # self Wo
            pl.BlockSpec((1, E), c2),                         # self bo
            pl.BlockSpec((1, E), c2),                         # norm gamma
            pl.BlockSpec((1, E), c2),                         # norm beta
            pl.BlockSpec((E, E), c2),                         # cross Wq
            pl.BlockSpec((E, 2 * E), c2),                     # cross Wkv
            pl.BlockSpec((E, E), c2),                         # cross Wo
            pl.BlockSpec((1, E), c2),                         # cross bo
            pl.BlockSpec((1, E), c2),                         # norm1 gamma
            pl.BlockSpec((1, E), c2),                         # norm1 beta
            pl.BlockSpec((E, F), c2),                         # ff W1
            pl.BlockSpec((1, F), c2),                         # ff b1
            pl.BlockSpec((F, E), c2),                         # ff W2
            pl.BlockSpec((1, E), c2),                         # ff b2
            pl.BlockSpec((1, E), c2),                         # norm2 gamma
            pl.BlockSpec((1, E), c2),                         # norm2 beta
        ],
        out_specs=pl.BlockSpec((1, L, E), lambda b: (b, 0, 0)),
        scratch_shapes=[pltpu.VMEM((L, E), jnp.float32)],     # per-head ctx
        compiler_params=_compiler_params(("parallel",)),
    )(x, enc, trg_mask_add, src_mask_add,
      lp["self_wqkv"], lp["self_wo"], lp["self_bo"], lp["norm_g"], lp["norm_b"],
      lp["cross_wq"], lp["cross_wkv"], lp["cross_wo"], lp["cross_bo"],
      lp["norm1_g"], lp["norm1_b"],
      lp["ff_w1"], lp["ff_b1"], lp["ff_w2"], lp["ff_b2"],
      lp["norm2_g"], lp["norm2_b"])


def fc_out_linear(x2d, w, b):
    M, E = x2d.shape
    V = w.shape[1]
    tm = M if M <= _FC_ROW_TILE_CAP else _FC_ROW_TILE_CAP   # mult of 8 if tiled
    tn = V if V <= _FC_VOCAB_TILE else _FC_VOCAB_TILE       # lane-dense if tiled
    return pl.pallas_call(
        _linear_bias_kernel,
        out_shape=jax.ShapeDtypeStruct((M, V), jnp.float32),
        grid=(pl.cdiv(M, tm), pl.cdiv(V, tn)),
        in_specs=[
            pl.BlockSpec((tm, E), lambda i, j: (i, 0)),
            pl.BlockSpec((E, tn), lambda i, j: (0, j)),
            pl.BlockSpec((1, tn), lambda i, j: (0, j)),
        ],
        out_specs=pl.BlockSpec((tm, tn), lambda i, j: (i, j)),
        compiler_params=_compiler_params(("parallel", "parallel")),
    )(x2d, w, b)


# ----------------------------------------------------------------------------
# Module logic (glue)
# ----------------------------------------------------------------------------

def decoder_forward(params, tokens, enc_out, src_mask, trg_mask,
                    heads, head_dim):
    N, L = tokens.shape
    E = params["word_emb"].shape[1]
    V = params["fc_w"].shape[1]
    # TODO(synk): embedding gather left to XLA; could become a Pallas
    # scalar-prefetch DMA-gather kernel for large vocabularies.
    pos = jnp.arange(L)
    x = params["word_emb"][tokens] + params["pos_emb"][pos][None, :, :]
    x = x.astype(jnp.bfloat16)
    enc = enc_out.astype(jnp.bfloat16)
    # additive masks: 0 = keep, -1e20 = masked (mask value 0 means masked).
    trg_add = jnp.where(trg_mask == 0, jnp.float32(_NEG_INF), jnp.float32(0.0))
    src_add = jnp.where(src_mask == 0, jnp.float32(_NEG_INF), jnp.float32(0.0))
    for lp in params["layers"]:
        x = decoder_layer(x, enc, trg_add, src_add, lp, heads, head_dim)
    logits = fc_out_linear(x.reshape(N * L, E), params["fc_w"], params["fc_b"])
    return logits.reshape(N, L, V)


# ----------------------------------------------------------------------------
# Deterministic parameter initialization
# ----------------------------------------------------------------------------

def init_params(key, vocab, E, num_layers, heads, fwd_exp, max_len):
    F = fwd_exp * E

    def nrm(k, shape, dtype=jnp.bfloat16):
        return (0.02 * jax.random.normal(k, shape)).astype(dtype)

    keys = jax.random.split(key, 3 + num_layers)
    params = {
        "word_emb": nrm(keys[0], (vocab, E), jnp.float32),
        "pos_emb": nrm(keys[1], (max_len, E), jnp.float32),
        "fc_w": nrm(keys[2], (E, vocab)),                 # bf16 matmul weight
        "fc_b": jnp.zeros((1, vocab), jnp.float32),
        "layers": [],
    }

    for i in range(num_layers):
        ks = jax.random.split(keys[3 + i], 7)
        params["layers"].append({
            # masked self-attention (Q/K/V fused, bias=False; fc_out has bias)
            "self_wqkv": nrm(ks[0], (E, 3 * E)),
            "self_wo": nrm(ks[1], (E, E)),
            "self_bo": jnp.zeros((1, E), jnp.float32),
            "norm_g": jnp.ones((1, E), jnp.float32),
            "norm_b": jnp.zeros((1, E), jnp.float32),
            # cross-attention (separate Wq and fused Wkv)
            "cross_wq": nrm(ks[2], (E, E)),
            "cross_wkv": nrm(ks[3], (E, 2 * E)),
            "cross_wo": nrm(ks[4], (E, E)),
            "cross_bo": jnp.zeros((1, E), jnp.float32),
            "norm1_g": jnp.ones((1, E), jnp.float32),
            "norm1_b": jnp.zeros((1, E), jnp.float32),
            # feed-forward
            "ff_w1": nrm(ks[5], (E, F)),
            "ff_b1": jnp.zeros((1, F), jnp.float32),
            "ff_w2": nrm(ks[6], (F, E)),
            "ff_b2": jnp.zeros((1, E), jnp.float32),
            "norm2_g": jnp.ones((1, E), jnp.float32),
            "norm2_b": jnp.zeros((1, E), jnp.float32),
        })
    return params


# ----------------------------------------------------------------------------
# Main
# ----------------------------------------------------------------------------

if __name__ == "__main__":
    trg_vocab_size = 16
    embed_size = 32
    num_layers = 2
    heads = 4
    head_dim = embed_size // heads
    forward_expansion = 2
    max_length = 16
    N, seq_len = 2, 8            # target batch / seq
    enc_len = 8                  # encoder output length

    root = jax.random.PRNGKey(0)
    kp, kt, ke = jax.random.split(root, 3)

    params = init_params(kp, trg_vocab_size, embed_size, num_layers, heads,
                         forward_expansion, max_length)

    tokens = jax.random.randint(kt, (N, seq_len), 0, trg_vocab_size,
                                dtype=jnp.int32)
    enc_out = (0.1 * jax.random.normal(ke, (N, enc_len, embed_size))
               ).astype(jnp.float32)

    # masks: 1.0 = keep, 0.0 = masked (masked_fill(mask == 0, -1e20))
    trg_mask = jnp.tril(jnp.ones((seq_len, seq_len), jnp.float32))
    src_mask = jnp.ones((seq_len, enc_len), jnp.float32)

    fwd = jax.jit(decoder_forward, static_argnames=("heads", "head_dim"))
    out = fwd(params, tokens, enc_out, src_mask, trg_mask,
              heads=heads, head_dim=head_dim)
    out = jax.block_until_ready(out)
    assert out.shape == (N, seq_len, trg_vocab_size)
    assert bool(jnp.all(jnp.isfinite(out)))
    print("KERNEL_OK")
</pallas_src>

<mosaic_0001>
module attributes {stable_mosaic.version = 11 : i64} {
  func.func @_decoder_layer_kernel(%arg0: i32, %arg1: memref<1x8x32xbf16, #tpu.memory_space<vmem>>, %arg2: memref<1x8x32xbf16, #tpu.memory_space<vmem>>, %arg3: memref<8x8xf32, #tpu.memory_space<vmem>>, %arg4: memref<8x8xf32, #tpu.memory_space<vmem>>, %arg5: memref<32x96xbf16, #tpu.memory_space<vmem>>, %arg6: memref<32x32xbf16, #tpu.memory_space<vmem>>, %arg7: memref<1x32xf32, #tpu.memory_space<vmem>>, %arg8: memref<1x32xf32, #tpu.memory_space<vmem>>, %arg9: memref<1x32xf32, #tpu.memory_space<vmem>>, %arg10: memref<32x32xbf16, #tpu.memory_space<vmem>>, %arg11: memref<32x64xbf16, #tpu.memory_space<vmem>>, %arg12: memref<32x32xbf16, #tpu.memory_space<vmem>>, %arg13: memref<1x32xf32, #tpu.memory_space<vmem>>, %arg14: memref<1x32xf32, #tpu.memory_space<vmem>>, %arg15: memref<1x32xf32, #tpu.memory_space<vmem>>, %arg16: memref<32x64xbf16, #tpu.memory_space<vmem>>, %arg17: memref<1x64xf32, #tpu.memory_space<vmem>>, %arg18: memref<64x32xbf16, #tpu.memory_space<vmem>>, %arg19: memref<1x32xf32, #tpu.memory_space<vmem>>, %arg20: memref<1x32xf32, #tpu.memory_space<vmem>>, %arg21: memref<1x32xf32, #tpu.memory_space<vmem>>, %arg22: memref<1x8x32xbf16, #tpu.memory_space<vmem>>, %arg23: memref<8x32xf32, #tpu.memory_space<vmem>>) attributes {dimension_semantics = [#tpu.dimension_semantics<parallel>], iteration_bounds = array<i64: 2>, scalar_prefetch = 0 : i64, scratch_operands = 1 : i64, tpu.core_type = #tpu.core_type<tc>, window_params = [{transform_indices = @transform_0, window_bounds = array<i64: 1, 8, 32>}, {transform_indices = @transform_1, window_bounds = array<i64: 1, 8, 32>}, {pipeline_mode = #tpu.pipeline_mode<synchronous>, transform_indices = @transform_2, window_bounds = array<i64: 8, 8>}, {pipeline_mode = #tpu.pipeline_mode<synchronous>, transform_indices = @transform_3, window_bounds = array<i64: 8, 8>}, {pipeline_mode = #tpu.pipeline_mode<synchronous>, transform_indices = @transform_4, window_bounds = array<i64: 32, 96>}, {pipeline_mode = #tpu.pipeline_mode<synchronous>, transform_indices = @transform_5, window_bounds = array<i64: 32, 32>}, {pipeline_mode = #tpu.pipeline_mode<synchronous>, transform_indices = @transform_6, window_bounds = array<i64: 1, 32>}, {pipeline_mode = #tpu.pipeline_mode<synchronous>, transform_indices = @transform_7, window_bounds = array<i64: 1, 32>}, {pipeline_mode = #tpu.pipeline_mode<synchronous>, transform_indices = @transform_8, window_bounds = array<i64: 1, 32>}, {pipeline_mode = #tpu.pipeline_mode<synchronous>, transform_indices = @transform_9, window_bounds = array<i64: 32, 32>}, {pipeline_mode = #tpu.pipeline_mode<synchronous>, transform_indices = @transform_10, window_bounds = array<i64: 32, 64>}, {pipeline_mode = #tpu.pipeline_mode<synchronous>, transform_indices = @transform_11, window_bounds = array<i64: 32, 32>}, {pipeline_mode = #tpu.pipeline_mode<synchronous>, transform_indices = @transform_12, window_bounds = array<i64: 1, 32>}, {pipeline_mode = #tpu.pipeline_mode<synchronous>, transform_indices = @transform_13, window_bounds = array<i64: 1, 32>}, {pipeline_mode = #tpu.pipeline_mode<synchronous>, transform_indices = @transform_14, window_bounds = array<i64: 1, 32>}, {pipeline_mode = #tpu.pipeline_mode<synchronous>, transform_indices = @transform_15, window_bounds = array<i64: 32, 64>}, {pipeline_mode = #tpu.pipeline_mode<synchronous>, transform_indices = @transform_16, window_bounds = array<i64: 1, 64>}, {pipeline_mode = #tpu.pipeline_mode<synchronous>, transform_indices = @transform_17, window_bounds = array<i64: 64, 32>}, {pipeline_mode = #tpu.pipeline_mode<synchronous>, transform_indices = @transform_18, window_bounds = array<i64: 1, 32>}, {pipeline_mode = #tpu.pipeline_mode<synchronous>, transform_indices = @transform_19, window_bounds = array<i64: 1, 32>}, {pipeline_mode = #tpu.pipeline_mode<synchronous>, transform_indices = @transform_20, window_bounds = array<i64: 1, 32>}, {transform_indices = @transform_21, window_bounds = array<i64: 1, 8, 32>}]} {
    %c0 = arith.constant 0 : index
    %c0_0 = arith.constant 0 : index
    %c0_1 = arith.constant 0 : index
    %0 = vector.load %arg1[%c0, %c0_0, %c0_1] : memref<1x8x32xbf16, #tpu.memory_space<vmem>>, vector<1x8x32xbf16>
    %1 = vector.shape_cast %0 : vector<1x8x32xbf16> to vector<8x32xbf16>
    %c0_2 = arith.constant 0 : index
    %c0_3 = arith.constant 0 : index
    %c0_4 = arith.constant 0 : index
    %2 = vector.load %arg2[%c0_2, %c0_3, %c0_4] : memref<1x8x32xbf16, #tpu.memory_space<vmem>>, vector<1x8x32xbf16>
    %3 = vector.shape_cast %2 : vector<1x8x32xbf16> to vector<8x32xbf16>
    %c0_5 = arith.constant 0 : index
    %c0_6 = arith.constant 0 : index
    %4 = vector.load %arg5[%c0_5, %c0_6] : memref<32x96xbf16, #tpu.memory_space<vmem>>, vector<32x96xbf16>
    %cst = arith.constant dense<0.000000e+00> : vector<8x96xf32>
    %5 = tpu.matmul %1, %4, %cst {dimension_numbers = #tpu.dot_dimension_numbers<[1], [0], [0], [1], [0, 0, 1, 1], [], []>} : vector<8x32xbf16>, vector<32x96xbf16>, vector<8x96xf32> -> vector<8x96xf32>
    %6 = vector.extract_strided_slice %5 {offsets = [0, 0], sizes = [8, 32], strides = [1, 1]} : vector<8x96xf32> to vector<8x32xf32>
    %7 = vector.extract_strided_slice %5 {offsets = [0, 32], sizes = [8, 32], strides = [1, 1]} : vector<8x96xf32> to vector<8x32xf32>
    %8 = vector.extract_strided_slice %5 {offsets = [0, 64], sizes = [8, 32], strides = [1, 1]} : vector<8x96xf32> to vector<8x32xf32>
    %c0_7 = arith.constant 0 : index
    %c0_8 = arith.constant 0 : index
    %9 = vector.load %arg3[%c0_7, %c0_8] : memref<8x8xf32, #tpu.memory_space<vmem>>, vector<8x8xf32>
    %10 = arith.truncf %6 : vector<8x32xf32> to vector<8x32xbf16>
    %11 = arith.truncf %7 : vector<8x32xf32> to vector<8x32xbf16>
    %12 = arith.truncf %8 : vector<8x32xf32> to vector<8x32xbf16>
    %13 = vector.extract_strided_slice %10 {offsets = [0, 0], sizes = [8, 8], strides = [1, 1]} : vector<8x32xbf16> to vector<8x8xbf16>
    %14 = vector.extract_strided_slice %11 {offsets = [0, 0], sizes = [8, 8], strides = [1, 1]} : vector<8x32xbf16> to vector<8x8xbf16>
    %15 = vector.extract_strided_slice %12 {offsets = [0, 0], sizes = [8, 8], strides = [1, 1]} : vector<8x32xbf16> to vector<8x8xbf16>
    %cst_9 = arith.constant dense<0.000000e+00> : vector<8x8xf32>
    %16 = tpu.matmul %13, %14, %cst_9 {dimension_numbers = #tpu.dot_dimension_numbers<[1], [1], [0], [0], [0, 0, 1, 0], [], []>} : vector<8x8xbf16>, vector<8x8xbf16>, vector<8x8xf32> -> vector<8x8xf32>
    %17 = arith.addf %16, %9 : vector<8x8xf32>
    %cst_10 = arith.constant 0.353553385 : f32
    %18 = vector.broadcast %cst_10 : f32 to vector<8x8xf32>
    %19 = arith.mulf %17, %18 : vector<8x8xf32>
    %cst_11 = arith.constant dense<0xFF800000> : vector<8xf32>
    %20 = vector.multi_reduction <maximumf>, %19, %cst_11 [1] : vector<8x8xf32> to vector<8xf32>
    %21 = vector.shape_cast %20 : vector<8xf32> to vector<8x1xf32>
    %22 = vector.broadcast %21 : vector<8x1xf32> to vector<8x8xf32>
    %23 = arith.subf %19, %22 : vector<8x8xf32>
    %24 = math.exp %23 : vector<8x8xf32>
    %cst_12 = arith.constant dense<0.000000e+00> : vector<8xf32>
    %25 = vector.multi_reduction <add>, %24, %cst_12 [1] : vector<8x8xf32> to vector<8xf32>
    %26 = vector.shape_cast %25 : vector<8xf32> to vector<8x1xf32>
    %27 = vector.broadcast %26 : vector<8x1xf32> to vector<8x8xf32>
    %28 = arith.divf %24, %27 : vector<8x8xf32>
    %29 = arith.truncf %28 : vector<8x8xf32> to vector<8x8xbf16>
    %cst_13 = arith.constant dense<0.000000e+00> : vector<8x8xf32>
    %30 = tpu.matmul %29, %15, %cst_13 {dimension_numbers = #tpu.dot_dimension_numbers<[1], [0], [0], [1], [0, 0, 1, 1], [], []>} : vector<8x8xbf16>, vector<8x8xbf16>, vector<8x8xf32> -> vector<8x8xf32>
    %c0_14 = arith.constant 0 : index
    %c0_15 = arith.constant 0 : index
    %31 = vector.load %arg23[%c0_14, %c0_15] : memref<8x32xf32, #tpu.memory_space<vmem>>, vector<8x8xf32>
    tpu.vector_store %arg23[%c0_14, %c0_15], %30 {strides = array<i32>} : memref<8x32xf32, #tpu.memory_space<vmem>>, vector<8x8xf32>,
    %32 = vector.extract_strided_slice %10 {offsets = [0, 8], sizes = [8, 8], strides = [1, 1]} : vector<8x32xbf16> to vector<8x8xbf16>
    %33 = vector.extract_strided_slice %11 {offsets = [0, 8], sizes = [8, 8], strides = [1, 1]} : vector<8x32xbf16> to vector<8x8xbf16>
    %34 = vector.extract_strided_slice %12 {offsets = [0, 8], sizes = [8, 8], strides = [1, 1]} : vector<8x32xbf16> to vector<8x8xbf16>
    %cst_16 = arith.constant dense<0.000000e+00> : vector<8x8xf32>
    %35 = tpu.matmul %32, %33, %cst_16 {dimension_numbers = #tpu.dot_dimension_numbers<[1], [1], [0], [0], [0, 0, 1, 0], [], []>} : vector<8x8xbf16>, vector<8x8xbf16>, vector<8x8xf32> -> vector<8x8xf32>
    %36 = arith.addf %35, %9 : vector<8x8xf32>
    %cst_17 = arith.constant 0.353553385 : f32
    %37 = vector.broadcast %cst_17 : f32 to vector<8x8xf32>
    %38 = arith.mulf %36, %37 : vector<8x8xf32>
    %cst_18 = arith.constant dense<0xFF800000> : vector<8xf32>
    %39 = vector.multi_reduction <maximumf>, %38, %cst_18 [1] : vector<8x8xf32> to vector<8xf32>
    %40 = vector.shape_cast %39 : vector<8xf32> to vector<8x1xf32>
    %41 = vector.broadcast %40 : vector<8x1xf32> to vector<8x8xf32>
    %42 = arith.subf %38, %41 : vector<8x8xf32>
    %43 = math.exp %42 : vector<8x8xf32>
    %cst_19 = arith.constant dense<0.000000e+00> : vector<8xf32>
    %44 = vector.multi_reduction <add>, %43, %cst_19 [1] : vector<8x8xf32> to vector<8xf32>
    %45 = vector.shape_cast %44 : vector<8xf32> to vector<8x1xf32>
    %46 = vector.broadcast %45 : vector<8x1xf32> to vector<8x8xf32>
    %47 = arith.divf %43, %46 : vector<8x8xf32>
    %48 = arith.truncf %47 : vector<8x8xf32> to vector<8x8xbf16>
    %cst_20 = arith.constant dense<0.000000e+00> : vector<8x8xf32>
    %49 = tpu.matmul %48, %34, %cst_20 {dimension_numbers = #tpu.dot_dimension_numbers<[1], [0], [0], [1], [0, 0, 1, 1], [], []>} : vector<8x8xbf16>, vector<8x8xbf16>, vector<8x8xf32> -> vector<8x8xf32>
    %c0_21 = arith.constant 0 : index
    %c8 = arith.constant 8 : index
    %50 = vector.load %arg23[%c0_21, %c8] : memref<8x32xf32, #tpu.memory_space<vmem>>, vector<8x8xf32>
    tpu.vector_store %arg23[%c0_21, %c8], %49 {strides = array<i32>} : memref<8x32xf32, #tpu.memory_space<vmem>>, vector<8x8xf32>,
    %51 = vector.extract_strided_slice %10 {offsets = [0, 16], sizes = [8, 8], strides = [1, 1]} : vector<8x32xbf16> to vector<8x8xbf16>
    %52 = vector.extract_strided_slice %11 {offsets = [0, 16], sizes = [8, 8], strides = [1, 1]} : vector<8x32xbf16> to vector<8x8xbf16>
    %53 = vector.extract_strided_slice %12 {offsets = [0, 16], sizes = [8, 8], strides = [1, 1]} : vector<8x32xbf16> to vector<8x8xbf16>
    %cst_22 = arith.constant dense<0.000000e+00> : vector<8x8xf32>
    %54 = tpu.matmul %51, %52, %cst_22 {dimension_numbers = #tpu.dot_dimension_numbers<[1], [1], [0], [0], [0, 0, 1, 0], [], []>} : vector<8x8xbf16>, vector<8x8xbf16>, vector<8x8xf32> -> vector<8x8xf32>
    %55 = arith.addf %54, %9 : vector<8x8xf32>
    %cst_23 = arith.constant 0.353553385 : f32
    %56 = vector.broadcast %cst_23 : f32 to vector<8x8xf32>
    %57 = arith.mulf %55, %56 : vector<8x8xf32>
    %cst_24 = arith.constant dense<0xFF800000> : vector<8xf32>
    %58 = vector.multi_reduction <maximumf>, %57, %cst_24 [1] : vector<8x8xf32> to vector<8xf32>
    %59 = vector.shape_cast %58 : vector<8xf32> to vector<8x1xf32>
    %60 = vector.broadcast %59 : vector<8x1xf32> to vector<8x8xf32>
    %61 = arith.subf %57, %60 : vector<8x8xf32>
    %62 = math.exp %61 : vector<8x8xf32>
    %cst_25 = arith.constant dense<0.000000e+00> : vector<8xf32>
    %63 = vector.multi_reduction <add>, %62, %cst_25 [1] : vector<8x8xf32> to vector<8xf32>
    %64 = vector.shape_cast %63 : vector<8xf32> to vector<8x1xf32>
    %65 = vector.broadcast %64 : vector<8x1xf32> to vector<8x8xf32>
    %66 = arith.divf %62, %65 : vector<8x8xf32>
    %67 = arith.truncf %66 : vector<8x8xf32> to vector<8x8xbf16>
    %cst_26 = arith.constant dense<0.000000e+00> : vector<8x8xf32>
    %68 = tpu.matmul %67, %53, %cst_26 {dimension_numbers = #tpu.dot_dimension_numbers<[1], [0], [0], [1], [0, 0, 1, 1], [], []>} : vector<8x8xbf16>, vector<8x8xbf16>, vector<8x8xf32> -> vector<8x8xf32>
    %c0_27 = arith.constant 0 : index
    %c16 = arith.constant 16 : index
    %69 = vector.load %arg23[%c0_27, %c16] : memref<8x32xf32, #tpu.memory_space<vmem>>, vector<8x8xf32>
    tpu.vector_store %arg23[%c0_27, %c16], %68 {strides = array<i32>} : memref<8x32xf32, #tpu.memory_space<vmem>>, vector<8x8xf32>,
    %70 = vector.extract_strided_slice %10 {offsets = [0, 24], sizes = [8, 8], strides = [1, 1]} : vector<8x32xbf16> to vector<8x8xbf16>
    %71 = vector.extract_strided_slice %11 {offsets = [0, 24], sizes = [8, 8], strides = [1, 1]} : vector<8x32xbf16> to vector<8x8xbf16>
    %72 = vector.extract_strided_slice %12 {offsets = [0, 24], sizes = [8, 8], strides = [1, 1]} : vector<8x32xbf16> to vector<8x8xbf16>
    %cst_28 = arith.constant dense<0.000000e+00> : vector<8x8xf32>
    %73 = tpu.matmul %70, %71, %cst_28 {dimension_numbers = #tpu.dot_dimension_numbers<[1], [1], [0], [0], [0, 0, 1, 0], [], []>} : vector<8x8xbf16>, vector<8x8xbf16>, vector<8x8xf32> -> vector<8x8xf32>
    %74 = arith.addf %73, %9 : vector<8x8xf32>
    %cst_29 = arith.constant 0.353553385 : f32
    %75 = vector.broadcast %cst_29 : f32 to vector<8x8xf32>
    %76 = arith.mulf %74, %75 : vector<8x8xf32>
    %cst_30 = arith.constant dense<0xFF800000> : vector<8xf32>
    %77 = vector.multi_reduction <maximumf>, %76, %cst_30 [1] : vector<8x8xf32> to vector<8xf32>
    %78 = vector.shape_cast %77 : vector<8xf32> to vector<8x1xf32>
    %79 = vector.broadcast %78 : vector<8x1xf32> to vector<8x8xf32>
    %80 = arith.subf %76, %79 : vector<8x8xf32>
    %81 = math.exp %80 : vector<8x8xf32>
    %cst_31 = arith.constant dense<0.000000e+00> : vector<8xf32>
    %82 = vector.multi_reduction <add>, %81, %cst_31 [1] : vector<8x8xf32> to vector<8xf32>
    %83 = vector.shape_cast %82 : vector<8xf32> to vector<8x1xf32>
    %84 = vector.broadcast %83 : vector<8x1xf32> to vector<8x8xf32>
    %85 = arith.divf %81, %84 : vector<8x8xf32>
    %86 = arith.truncf %85 : vector<8x8xf32> to vector<8x8xbf16>
    %cst_32 = arith.constant dense<0.000000e+00> : vector<8x8xf32>
    %87 = tpu.matmul %86, %72, %cst_32 {dimension_numbers = #tpu.dot_dimension_numbers<[1], [0], [0], [1], [0, 0, 1, 1], [], []>} : vector<8x8xbf16>, vector<8x8xbf16>, vector<8x8xf32> -> vector<8x8xf32>
    %c0_33 = arith.constant 0 : index
    %c24 = arith.constant 24 : index
    %88 = vector.load %arg23[%c0_33, %c24] : memref<8x32xf32, #tpu.memory_space<vmem>>, vector<8x8xf32>
    tpu.vector_store %arg23[%c0_33, %c24], %87 {strides = array<i32>} : memref<8x32xf32, #tpu.memory_space<vmem>>, vector<8x8xf32>,
    %c0_34 = arith.constant 0 : index
    %c0_35 = arith.constant 0 : index
    %89 = vector.load %arg23[%c0_34, %c0_35] : memref<8x32xf32, #tpu.memory_space<vmem>>, vector<8x32xf32>
    %90 = arith.truncf %89 : vector<8x32xf32> to vector<8x32xbf16>
    %c0_36 = arith.constant 0 : index
    %c0_37 = arith.constant 0 : index
    %91 = vector.load %arg6[%c0_36, %c0_37] : memref<32x32xbf16, #tpu.memory_space<vmem>>, vector<32x32xbf16>
    %cst_38 = arith.constant dense<0.000000e+00> : vector<8x32xf32>
    %92 = tpu.matmul %90, %91, %cst_38 {dimension_numbers = #tpu.dot_dimension_numbers<[1], [0], [0], [1], [0, 0, 1, 1], [], []>} : vector<8x32xbf16>, vector<32x32xbf16>, vector<8x32xf32> -> vector<8x32xf32>
    %c0_39 = arith.constant 0 : index
    %c0_40 = arith.constant 0 : index
    %93 = vector.load %arg7[%c0_39, %c0_40] : memref<1x32xf32, #tpu.memory_space<vmem>>, vector<1x32xf32>
    %94 = vector.broadcast %93 : vector<1x32xf32> to vector<8x32xf32>
    %95 = arith.addf %92, %94 : vector<8x32xf32>
    %96 = arith.extf %1 : vector<8x32xbf16> to vector<8x32xf32>
    %97 = arith.addf %95, %96 : vector<8x32xf32>
    %c0_41 = arith.constant 0 : index
    %c0_42 = arith.constant 0 : index
    %98 = vector.load %arg8[%c0_41, %c0_42] : memref<1x32xf32, #tpu.memory_space<vmem>>, vector<1x32xf32>
    %c0_43 = arith.constant 0 : index
    %c0_44 = arith.constant 0 : index
    %99 = vector.load %arg9[%c0_43, %c0_44] : memref<1x32xf32, #tpu.memory_space<vmem>>, vector<1x32xf32>
    %cst_45 = arith.constant dense<0.000000e+00> : vector<8xf32>
    %100 = vector.multi_reduction <add>, %97, %cst_45 [1] : vector<8x32xf32> to vector<8xf32>
    %101 = vector.shape_cast %100 : vector<8xf32> to vector<8x1xf32>
    %cst_46 = arith.constant 3.200000e+01 : f32
    %102 = vector.broadcast %cst_46 : f32 to vector<8x1xf32>
    %103 = arith.divf %101, %102 : vector<8x1xf32>
    %104 = vector.broadcast %103 : vector<8x1xf32> to vector<8x32xf32>
    %105 = arith.subf %97, %104 : vector<8x32xf32>
    %106 = arith.mulf %105, %105 : vector<8x32xf32>
    %cst_47 = arith.constant dense<0.000000e+00> : vector<8xf32>
    %107 = vector.multi_reduction <add>, %106, %cst_47 [1] : vector<8x32xf32> to vector<8xf32>
    %108 = vector.shape_cast %107 : vector<8xf32> to vector<8x1xf32>
    %cst_48 = arith.constant 3.200000e+01 : f32
    %109 = vector.broadcast %cst_48 : f32 to vector<8x1xf32>
    %110 = arith.divf %108, %109 : vector<8x1xf32>
    %111 = vector.broadcast %103 : vector<8x1xf32> to vector<8x32xf32>
    %112 = arith.subf %97, %111 : vector<8x32xf32>
    %cst_49 = arith.constant 9.99999974E-6 : f32
    %113 = vector.broadcast %cst_49 : f32 to vector<8x1xf32>
    %114 = arith.addf %110, %113 : vector<8x1xf32>
    %115 = math.rsqrt %114 : vector<8x1xf32>
    %116 = vector.broadcast %115 : vector<8x1xf32> to vector<8x32xf32>
    %117 = arith.mulf %112, %116 : vector<8x32xf32>
    %118 = vector.broadcast %98 : vector<1x32xf32> to vector<8x32xf32>
    %119 = arith.mulf %117, %118 : vector<8x32xf32>
    %120 = vector.broadcast %99 : vector<1x32xf32> to vector<8x32xf32>
    %121 = arith.addf %119, %120 : vector<8x32xf32>
    %122 = arith.truncf %121 : vector<8x32xf32> to vector<8x32xbf16>
    %c0_50 = arith.constant 0 : index
    %c0_51 = arith.constant 0 : index
    %123 = vector.load %arg10[%c0_50, %c0_51] : memref<32x32xbf16, #tpu.memory_space<vmem>>, vector<32x32xbf16>
    %cst_52 = arith.constant dense<0.000000e+00> : vector<8x32xf32>
    %124 = tpu.matmul %122, %123, %cst_52 {dimension_numbers = #tpu.dot_dimension_numbers<[1], [0], [0], [1], [0, 0, 1, 1], [], []>} : vector<8x32xbf16>, vector<32x32xbf16>, vector<8x32xf32> -> vector<8x32xf32>
    %c0_53 = arith.constant 0 : index
    %c0_54 = arith.constant 0 : index
    %125 = vector.load %arg11[%c0_53, %c0_54] : memref<32x64xbf16, #tpu.memory_space<vmem>>, vector<32x64xbf16>
    %cst_55 = arith.constant dense<0.000000e+00> : vector<8x64xf32>
    %126 = tpu.matmul %3, %125, %cst_55 {dimension_numbers = #tpu.dot_dimension_numbers<[1], [0], [0], [1], [0, 0, 1, 1], [], []>} : vector<8x32xbf16>, vector<32x64xbf16>, vector<8x64xf32> -> vector<8x64xf32>
    %127 = vector.extract_strided_slice %126 {offsets = [0, 0], sizes = [8, 32], strides = [1, 1]} : vector<8x64xf32> to vector<8x32xf32>
    %128 = vector.extract_strided_slice %126 {offsets = [0, 32], sizes = [8, 32], strides = [1, 1]} : vector<8x64xf32> to vector<8x32xf32>
    %c0_56 = arith.constant 0 : index
    %c0_57 = arith.constant 0 : index
    %129 = vector.load %arg4[%c0_56, %c0_57] : memref<8x8xf32, #tpu.memory_space<vmem>>, vector<8x8xf32>
    %130 = arith.truncf %124 : vector<8x32xf32> to vector<8x32xbf16>
    %131 = arith.truncf %127 : vector<8x32xf32> to vector<8x32xbf16>
    %132 = arith.truncf %128 : vector<8x32xf32> to vector<8x32xbf16>
    %133 = vector.extract_strided_slice %130 {offsets = [0, 0], sizes = [8, 8], strides = [1, 1]} : vector<8x32xbf16> to vector<8x8xbf16>
    %134 = vector.extract_strided_slice %131 {offsets = [0, 0], sizes = [8, 8], strides = [1, 1]} : vector<8x32xbf16> to vector<8x8xbf16>
    %135 = vector.extract_strided_slice %132 {offsets = [0, 0], sizes = [8, 8], strides = [1, 1]} : vector<8x32xbf16> to vector<8x8xbf16>
    %cst_58 = arith.constant dense<0.000000e+00> : vector<8x8xf32>
    %136 = tpu.matmul %133, %134, %cst_58 {dimension_numbers = #tpu.dot_dimension_numbers<[1], [1], [0], [0], [0, 0, 1, 0], [], []>} : vector<8x8xbf16>, vector<8x8xbf16>, vector<8x8xf32> -> vector<8x8xf32>
    %137 = arith.addf %136, %129 : vector<8x8xf32>
    %cst_59 = arith.constant 0.353553385 : f32
    %138 = vector.broadcast %cst_59 : f32 to vector<8x8xf32>
    %139 = arith.mulf %137, %138 : vector<8x8xf32>
    %cst_60 = arith.constant dense<0xFF800000> : vector<8xf32>
    %140 = vector.multi_reduction <maximumf>, %139, %cst_60 [1] : vector<8x8xf32> to vector<8xf32>
    %141 = vector.shape_cast %140 : vector<8xf32> to vector<8x1xf32>
    %142 = vector.broadcast %141 : vector<8x1xf32> to vector<8x8xf32>
    %143 = arith.subf %139, %142 : vector<8x8xf32>
    %144 = math.exp %143 : vector<8x8xf32>
    %cst_61 = arith.constant dense<0.000000e+00> : vector<8xf32>
    %145 = vector.multi_reduction <add>, %144, %cst_61 [1] : vector<8x8xf32> to vector<8xf32>
    %146 = vector.shape_cast %145 : vector<8xf32> to vector<8x1xf32>
    %147 = vector.broadcast %146 : vector<8x1xf32> to vector<8x8xf32>
    %148 = arith.divf %144, %147 : vector<8x8xf32>
    %149 = arith.truncf %148 : vector<8x8xf32> to vector<8x8xbf16>
    %cst_62 = arith.constant dense<0.000000e+00> : vector<8x8xf32>
    %150 = tpu.matmul %149, %135, %cst_62 {dimension_numbers = #tpu.dot_dimension_numbers<[1], [0], [0], [1], [0, 0, 1, 1], [], []>} : vector<8x8xbf16>, vector<8x8xbf16>, vector<8x8xf32> -> vector<8x8xf32>
    %c0_63 = arith.constant 0 : index
    %c0_64 = arith.constant 0 : index
    %151 = vector.load %arg23[%c0_63, %c0_64] : memref<8x32xf32, #tpu.memory_space<vmem>>, vector<8x8xf32>
    tpu.vector_store %arg23[%c0_63, %c0_64], %150 {strides = array<i32>} : memref<8x32xf32, #tpu.memory_space<vmem>>, vector<8x8xf32>,
    %152 = vector.extract_strided_slice %130 {offsets = [0, 8], sizes = [8, 8], strides = [1, 1]} : vector<8x32xbf16> to vector<8x8xbf16>
    %153 = vector.extract_strided_slice %131 {offsets = [0, 8], sizes = [8, 8], strides = [1, 1]} : vector<8x32xbf16> to vector<8x8xbf16>
    %154 = vector.extract_strided_slice %132 {offsets = [0, 8], sizes = [8, 8], strides = [1, 1]} : vector<8x32xbf16> to vector<8x8xbf16>
    %cst_65 = arith.constant dense<0.000000e+00> : vector<8x8xf32>
    %155 = tpu.matmul %152, %153, %cst_65 {dimension_numbers = #tpu.dot_dimension_numbers<[1], [1], [0], [0], [0, 0, 1, 0], [], []>} : vector<8x8xbf16>, vector<8x8xbf16>, vector<8x8xf32> -> vector<8x8xf32>
    %156 = arith.addf %155, %129 : vector<8x8xf32>
    %cst_66 = arith.constant 0.353553385 : f32
    %157 = vector.broadcast %cst_66 : f32 to vector<8x8xf32>
    %158 = arith.mulf %156, %157 : vector<8x8xf32>
    %cst_67 = arith.constant dense<0xFF800000> : vector<8xf32>
    %159 = vector.multi_reduction <maximumf>, %158, %cst_67 [1] : vector<8x8xf32> to vector<8xf32>
    %160 = vector.shape_cast %159 : vector<8xf32> to vector<8x1xf32>
    %161 = vector.broadcast %160 : vector<8x1xf32> to vector<8x8xf32>
    %162 = arith.subf %158, %161 : vector<8x8xf32>
    %163 = math.exp %162 : vector<8x8xf32>
    %cst_68 = arith.constant dense<0.000000e+00> : vector<8xf32>
    %164 = vector.multi_reduction <add>, %163, %cst_68 [1] : vector<8x8xf32> to vector<8xf32>
    %165 = vector.shape_cast %164 : vector<8xf32> to vector<8x1xf32>
    %166 = vector.broadcast %165 : vector<8x1xf32> to vector<8x8xf32>
    %167 = arith.divf %163, %166 : vector<8x8xf32>
    %168 = arith.truncf %167 : vector<8x8xf32> to vector<8x8xbf16>
    %cst_69 = arith.constant dense<0.000000e+00> : vector<8x8xf32>
    %169 = tpu.matmul %168, %154, %cst_69 {dimension_numbers = #tpu.dot_dimension_numbers<[1], [0], [0], [1], [0, 0, 1, 1], [], []>} : vector<8x8xbf16>, vector<8x8xbf16>, vector<8x8xf32> -> vector<8x8xf32>
    %c0_70 = arith.constant 0 : index
    %c8_71 = arith.constant 8 : index
    %170 = vector.load %arg23[%c0_70, %c8_71] : memref<8x32xf32, #tpu.memory_space<vmem>>, vector<8x8xf32>
    tpu.vector_store %arg23[%c0_70, %c8_71], %169 {strides = array<i32>} : memref<8x32xf32, #tpu.memory_space<vmem>>, vector<8x8xf32>,
    %171 = vector.extract_strided_slice %130 {offsets = [0, 16], sizes = [8, 8], strides = [1, 1]} : vector<8x32xbf16> to vector<8x8xbf16>
    %172 = vector.extract_strided_slice %131 {offsets = [0, 16], sizes = [8, 8], strides = [1, 1]} : vector<8x32xbf16> to vector<8x8xbf16>
    %173 = vector.extract_strided_slice %132 {offsets = [0, 16], sizes = [8, 8], strides = [1, 1]} : vector<8x32xbf16> to vector<8x8xbf16>
    %cst_72 = arith.constant dense<0.000000e+00> : vector<8x8xf32>
    %174 = tpu.matmul %171, %172, %cst_72 {dimension_numbers = #tpu.dot_dimension_numbers<[1], [1], [0], [0], [0, 0, 1, 0], [], []>} : vector<8x8xbf16>, vector<8x8xbf16>, vector<8x8xf32> -> vector<8x8xf32>
    %175 = arith.addf %174, %129 : vector<8x8xf32>
    %cst_73 = arith.constant 0.353553385 : f32
    %176 = vector.broadcast %cst_73 : f32 to vector<8x8xf32>
    %177 = arith.mulf %175, %176 : vector<8x8xf32>
    %cst_74 = arith.constant dense<0xFF800000> : vector<8xf32>
    %178 = vector.multi_reduction <maximumf>, %177, %cst_74 [1] : vector<8x8xf32> to vector<8xf32>
    %179 = vector.shape_cast %178 : vector<8xf32> to vector<8x1xf32>
    %180 = vector.broadcast %179 : vector<8x1xf32> to vector<8x8xf32>
    %181 = arith.subf %177, %180 : vector<8x8xf32>
    %182 = math.exp %181 : vector<8x8xf32>
    %cst_75 = arith.constant dense<0.000000e+00> : vector<8xf32>
    %183 = vector.multi_reduction <add>, %182, %cst_75 [1] : vector<8x8xf32> to vector<8xf32>
    %184 = vector.shape_cast %183 : vector<8xf32> to vector<8x1xf32>
    %185 = vector.broadcast %184 : vector<8x1xf32> to vector<8x8xf32>
    %186 = arith.divf %182, %185 : vector<8x8xf32>
    %187 = arith.truncf %186 : vector<8x8xf32> to vector<8x8xbf16>
    %cst_76 = arith.constant dense<0.000000e+00> : vector<8x8xf32>
    %188 = tpu.matmul %187, %173, %cst_76 {dimension_numbers = #tpu.dot_dimension_numbers<[1], [0], [0], [1], [0, 0, 1, 1], [], []>} : vector<8x8xbf16>, vector<8x8xbf16>, vector<8x8xf32> -> vector<8x8xf32>
    %c0_77 = arith.constant 0 : index
    %c16_78 = arith.constant 16 : index
    %189 = vector.load %arg23[%c0_77, %c16_78] : memref<8x32xf32, #tpu.memory_space<vmem>>, vector<8x8xf32>
    tpu.vector_store %arg23[%c0_77, %c16_78], %188 {strides = array<i32>} : memref<8x32xf32, #tpu.memory_space<vmem>>, vector<8x8xf32>,
    %190 = vector.extract_strided_slice %130 {offsets = [0, 24], sizes = [8, 8], strides = [1, 1]} : vector<8x32xbf16> to vector<8x8xbf16>
    %191 = vector.extract_strided_slice %131 {offsets = [0, 24], sizes = [8, 8], strides = [1, 1]} : vector<8x32xbf16> to vector<8x8xbf16>
    %192 = vector.extract_strided_slice %132 {offsets = [0, 24], sizes = [8, 8], strides = [1, 1]} : vector<8x32xbf16> to vector<8x8xbf16>
    %cst_79 = arith.constant dense<0.000000e+00> : vector<8x8xf32>
    %193 = tpu.matmul %190, %191, %cst_79 {dimension_numbers = #tpu.dot_dimension_numbers<[1], [1], [0], [0], [0, 0, 1, 0], [], []>} : vector<8x8xbf16>, vector<8x8xbf16>, vector<8x8xf32> -> vector<8x8xf32>
    %194 = arith.addf %193, %129 : vector<8x8xf32>
    %cst_80 = arith.constant 0.353553385 : f32
    %195 = vector.broadcast %cst_80 : f32 to vector<8x8xf32>
    %196 = arith.mulf %194, %195 : vector<8x8xf32>
    %cst_81 = arith.constant dense<0xFF800000> : vector<8xf32>
    %197 = vector.multi_reduction <maximumf>, %196, %cst_81 [1] : vector<8x8xf32> to vector<8xf32>
    %198 = vector.shape_cast %197 : vector<8xf32> to vector<8x1xf32>
    %199 = vector.broadcast %198 : vector<8x1xf32> to vector<8x8xf32>
    %200 = arith.subf %196, %199 : vector<8x8xf32>
    %201 = math.exp %200 : vector<8x8xf32>
    %cst_82 = arith.constant dense<0.000000e+00> : vector<8xf32>
    %202 = vector.multi_reduction <add>, %201, %cst_82 [1] : vector<8x8xf32> to vector<8xf32>
    %203 = vector.shape_cast %202 : vector<8xf32> to vector<8x1xf32>
    %204 = vector.broadcast %203 : vector<8x1xf32> to vector<8x8xf32>
    %205 = arith.divf %201, %204 : vector<8x8xf32>
    %206 = arith.truncf %205 : vector<8x8xf32> to vector<8x8xbf16>
    %cst_83 = arith.constant dense<0.000000e+00> : vector<8x8xf32>
    %207 = tpu.matmul %206, %192, %cst_83 {dimension_numbers = #tpu.dot_dimension_numbers<[1], [0], [0], [1], [0, 0, 1, 1], [], []>} : vector<8x8xbf16>, vector<8x8xbf16>, vector<8x8xf32> -> vector<8x8xf32>
    %c0_84 = arith.constant 0 : index
    %c24_85 = arith.constant 24 : index
    %208 = vector.load %arg23[%c0_84, %c24_85] : memref<8x32xf32, #tpu.memory_space<vmem>>, vector<8x8xf32>
    tpu.vector_store %arg23[%c0_84, %c24_85], %207 {strides = array<i32>} : memref<8x32xf32, #tpu.memory_space<vmem>>, vector<8x8xf32>,
    %c0_86 = arith.constant 0 : index
    %c0_87 = arith.constant 0 : index
    %209 = vector.load %arg23[%c0_86, %c0_87] : memref<8x32xf32, #tpu.memory_space<vmem>>, vector<8x32xf32>
    %210 = arith.truncf %209 : vector<8x32xf32> to vector<8x32xbf16>
    %c0_88 = arith.constant 0 : index
    %c0_89 = arith.constant 0 : index
    %211 = vector.load %arg12[%c0_88, %c0_89] : memref<32x32xbf16, #tpu.memory_space<vmem>>, vector<32x32xbf16>
    %cst_90 = arith.constant dense<0.000000e+00> : vector<8x32xf32>
    %212 = tpu.matmul %210, %211, %cst_90 {dimension_numbers = #tpu.dot_dimension_numbers<[1], [0], [0], [1], [0, 0, 1, 1], [], []>} : vector<8x32xbf16>, vector<32x32xbf16>, vector<8x32xf32> -> vector<8x32xf32>
    %c0_91 = arith.constant 0 : index
    %c0_92 = arith.constant 0 : index
    %213 = vector.load %arg13[%c0_91, %c0_92] : memref<1x32xf32, #tpu.memory_space<vmem>>, vector<1x32xf32>
    %214 = vector.broadcast %213 : vector<1x32xf32> to vector<8x32xf32>
    %215 = arith.addf %212, %214 : vector<8x32xf32>
    %216 = arith.addf %215, %121 : vector<8x32xf32>
    %c0_93 = arith.constant 0 : index
    %c0_94 = arith.constant 0 : index
    %217 = vector.load %arg14[%c0_93, %c0_94] : memref<1x32xf32, #tpu.memory_space<vmem>>, vector<1x32xf32>
    %c0_95 = arith.constant 0 : index
    %c0_96 = arith.constant 0 : index
    %218 = vector.load %arg15[%c0_95, %c0_96] : memref<1x32xf32, #tpu.memory_space<vmem>>, vector<1x32xf32>
    %cst_97 = arith.constant dense<0.000000e+00> : vector<8xf32>
    %219 = vector.multi_reduction <add>, %216, %cst_97 [1] : vector<8x32xf32> to vector<8xf32>
    %220 = vector.shape_cast %219 : vector<8xf32> to vector<8x1xf32>
    %cst_98 = arith.constant 3.200000e+01 : f32
    %221 = vector.broadcast %cst_98 : f32 to vector<8x1xf32>
    %222 = arith.divf %220, %221 : vector<8x1xf32>
    %223 = vector.broadcast %222 : vector<8x1xf32> to vector<8x32xf32>
    %224 = arith.subf %216, %223 : vector<8x32xf32>
    %225 = arith.mulf %224, %224 : vector<8x32xf32>
    %cst_99 = arith.constant dense<0.000000e+00> : vector<8xf32>
    %226 = vector.multi_reduction <add>, %225, %cst_99 [1] : vector<8x32xf32> to vector<8xf32>
    %227 = vector.shape_cast %226 : vector<8xf32> to vector<8x1xf32>
    %cst_100 = arith.constant 3.200000e+01 : f32
    %228 = vector.broadcast %cst_100 : f32 to vector<8x1xf32>
    %229 = arith.divf %227, %228 : vector<8x1xf32>
    %230 = vector.broadcast %222 : vector<8x1xf32> to vector<8x32xf32>
    %231 = arith.subf %216, %230 : vector<8x32xf32>
    %cst_101 = arith.constant 9.99999974E-6 : f32
    %232 = vector.broadcast %cst_101 : f32 to vector<8x1xf32>
    %233 = arith.addf %229, %232 : vector<8x1xf32>
    %234 = math.rsqrt %233 : vector<8x1xf32>
    %235 = vector.broadcast %234 : vector<8x1xf32> to vector<8x32xf32>
    %236 = arith.mulf %231, %235 : vector<8x32xf32>
    %237 = vector.broadcast %217 : vector<1x32xf32> to vector<8x32xf32>
    %238 = arith.mulf %236, %237 : vector<8x32xf32>
    %239 = vector.broadcast %218 : vector<1x32xf32> to vector<8x32xf32>
    %240 = arith.addf %238, %239 : vector<8x32xf32>
    %241 = arith.truncf %240 : vector<8x32xf32> to vector<8x32xbf16>
    %c0_102 = arith.constant 0 : index
    %c0_103 = arith.constant 0 : index
    %242 = vector.load %arg16[%c0_102, %c0_103] : memref<32x64xbf16, #tpu.memory_space<vmem>>, vector<32x64xbf16>
    %cst_104 = arith.constant dense<0.000000e+00> : vector<8x64xf32>
    %243 = tpu.matmul %241, %242, %cst_104 {dimension_numbers = #tpu.dot_dimension_numbers<[1], [0], [0], [1], [0, 0, 1, 1], [], []>} : vector<8x32xbf16>, vector<32x64xbf16>, vector<8x64xf32> -> vector<8x64xf32>
    %c0_105 = arith.constant 0 : index
    %c0_106 = arith.constant 0 : index
    %244 = vector.load %arg17[%c0_105, %c0_106] : memref<1x64xf32, #tpu.memory_space<vmem>>, vector<1x64xf32>
    %245 = vector.broadcast %244 : vector<1x64xf32> to vector<8x64xf32>
    %246 = arith.addf %243, %245 : vector<8x64xf32>
    %cst_107 = arith.constant 0.000000e+00 : f32
    %247 = vector.broadcast %cst_107 : f32 to vector<8x64xf32>
    %248 = arith.maximumf %246, %247 : vector<8x64xf32>
    %249 = arith.truncf %248 : vector<8x64xf32> to vector<8x64xbf16>
    %c0_108 = arith.constant 0 : index
    %c0_109 = arith.constant 0 : index
    %250 = vector.load %arg18[%c0_108, %c0_109] : memref<64x32xbf16, #tpu.memory_space<vmem>>, vector<64x32xbf16>
    %cst_110 = arith.constant dense<0.000000e+00> : vector<8x32xf32>
    %251 = tpu.matmul %249, %250, %cst_110 {dimension_numbers = #tpu.dot_dimension_numbers<[1], [0], [0], [1], [0, 0, 1, 1], [], []>} : vector<8x64xbf16>, vector<64x32xbf16>, vector<8x32xf32> -> vector<8x32xf32>
    %c0_111 = arith.constant 0 : index
    %c0_112 = arith.constant 0 : index
    %252 = vector.load %arg19[%c0_111, %c0_112] : memref<1x32xf32, #tpu.memory_space<vmem>>, vector<1x32xf32>
    %253 = vector.broadcast %252 : vector<1x32xf32> to vector<8x32xf32>
    %254 = arith.addf %251, %253 : vector<8x32xf32>
    %255 = arith.addf %254, %240 : vector<8x32xf32>
    %c0_113 = arith.constant 0 : index
    %c0_114 = arith.constant 0 : index
    %256 = vector.load %arg20[%c0_113, %c0_114] : memref<1x32xf32, #tpu.memory_space<vmem>>, vector<1x32xf32>
    %c0_115 = arith.constant 0 : index
    %c0_116 = arith.constant 0 : index
    %257 = vector.load %arg21[%c0_115, %c0_116] : memref<1x32xf32, #tpu.memory_space<vmem>>, vector<1x32xf32>
    %cst_117 = arith.constant dense<0.000000e+00> : vector<8xf32>
    %258 = vector.multi_reduction <add>, %255, %cst_117 [1] : vector<8x32xf32> to vector<8xf32>
    %259 = vector.shape_cast %258 : vector<8xf32> to vector<8x1xf32>
    %cst_118 = arith.constant 3.200000e+01 : f32
    %260 = vector.broadcast %cst_118 : f32 to vector<8x1xf32>
    %261 = arith.divf %259, %260 : vector<8x1xf32>
    %262 = vector.broadcast %261 : vector<8x1xf32> to vector<8x32xf32>
    %263 = arith.subf %255, %262 : vector<8x32xf32>
    %264 = arith.mulf %263, %263 : vector<8x32xf32>
    %cst_119 = arith.constant dense<0.000000e+00> : vector<8xf32>
    %265 = vector.multi_reduction <add>, %264, %cst_119 [1] : vector<8x32xf32> to vector<8xf32>
    %266 = vector.shape_cast %265 : vector<8xf32> to vector<8x1xf32>
    %cst_120 = arith.constant 3.200000e+01 : f32
    %267 = vector.broadcast %cst_120 : f32 to vector<8x1xf32>
    %268 = arith.divf %266, %267 : vector<8x1xf32>
    %269 = vector.broadcast %261 : vector<8x1xf32> to vector<8x32xf32>
    %270 = arith.subf %255, %269 : vector<8x32xf32>
    %cst_121 = arith.constant 9.99999974E-6 : f32
    %271 = vector.broadcast %cst_121 : f32 to vector<8x1xf32>
    %272 = arith.addf %268, %271 : vector<8x1xf32>
    %273 = math.rsqrt %272 : vector<8x1xf32>
    %274 = vector.broadcast %273 : vector<8x1xf32> to vector<8x32xf32>
    %275 = arith.mulf %270, %274 : vector<8x32xf32>
    %276 = vector.broadcast %256 : vector<1x32xf32> to vector<8x32xf32>
    %277 = arith.mulf %275, %276 : vector<8x32xf32>
    %278 = vector.broadcast %257 : vector<1x32xf32> to vector<8x32xf32>
    %279 = arith.addf %277, %278 : vector<8x32xf32>
    %280 = arith.truncf %279 : vector<8x32xf32> to vector<8x32xbf16>
    %c0_122 = arith.constant 0 : index
    %c0_123 = arith.constant 0 : index
    %c0_124 = arith.constant 0 : index
    %281 = vector.load %arg22[%c0_122, %c0_123, %c0_124] : memref<1x8x32xbf16, #tpu.memory_space<vmem>>, vector<1x8x32xbf16>
    %282 = vector.shape_cast %281 : vector<1x8x32xbf16> to vector<8x32xbf16>
    %283 = vector.shape_cast %280 : vector<8x32xbf16> to vector<1x8x32xbf16>
    tpu.vector_store %arg22[%c0_122, %c0_123, %c0_124], %283 {strides = array<i32>} : memref<1x8x32xbf16, #tpu.memory_space<vmem>>, vector<1x8x32xbf16>,
    return
  }
  func.func @transform_0(%arg0: i32) -> (i32, i32, i32) {
    %c0_i32 = arith.constant 0 : i32
    %c0_i32_0 = arith.constant 0 : i32
    %c0_i32_1 = arith.constant 0 : i32
    return %arg0, %c0_i32, %c0_i32_0 : i32, i32, i32
  }
  func.func @transform_1(%arg0: i32) -> (i32, i32, i32) {
    %c0_i32 = arith.constant 0 : i32
    %c0_i32_0 = arith.constant 0 : i32
    %c0_i32_1 = arith.constant 0 : i32
    return %arg0, %c0_i32, %c0_i32_0 : i32, i32, i32
  }
  func.func @transform_2(%arg0: i32) -> (i32, i32) {
    %c0_i32 = arith.constant 0 : i32
    %c0_i32_0 = arith.constant 0 : i32
    %c0_i32_1 = arith.constant 0 : i32
    return %c0_i32, %c0_i32_0 : i32, i32
  }
  func.func @transform_3(%arg0: i32) -> (i32, i32) {
    %c0_i32 = arith.constant 0 : i32
    %c0_i32_0 = arith.constant 0 : i32
    %c0_i32_1 = arith.constant 0 : i32
    return %c0_i32, %c0_i32_0 : i32, i32
  }
  func.func @transform_4(%arg0: i32) -> (i32, i32) {
    %c0_i32 = arith.constant 0 : i32
    %c0_i32_0 = arith.constant 0 : i32
    %c0_i32_1 = arith.constant 0 : i32
    return %c0_i32, %c0_i32_0 : i32, i32
  }
  func.func @transform_5(%arg0: i32) -> (i32, i32) {
    %c0_i32 = arith.constant 0 : i32
    %c0_i32_0 = arith.constant 0 : i32
    %c0_i32_1 = arith.constant 0 : i32
    return %c0_i32, %c0_i32_0 : i32, i32
  }
  func.func @transform_6(%arg0: i32) -> (i32, i32) {
    %c0_i32 = arith.constant 0 : i32
    %c0_i32_0 = arith.constant 0 : i32
    %c0_i32_1 = arith.constant 0 : i32
    return %c0_i32, %c0_i32_0 : i32, i32
  }
  func.func @transform_7(%arg0: i32) -> (i32, i32) {
    %c0_i32 = arith.constant 0 : i32
    %c0_i32_0 = arith.constant 0 : i32
    %c0_i32_1 = arith.constant 0 : i32
    return %c0_i32, %c0_i32_0 : i32, i32
  }
  func.func @transform_8(%arg0: i32) -> (i32, i32) {
    %c0_i32 = arith.constant 0 : i32
    %c0_i32_0 = arith.constant 0 : i32
    %c0_i32_1 = arith.constant 0 : i32
    return %c0_i32, %c0_i32_0 : i32, i32
  }
  func.func @transform_9(%arg0: i32) -> (i32, i32) {
    %c0_i32 = arith.constant 0 : i32
    %c0_i32_0 = arith.constant 0 : i32
    %c0_i32_1 = arith.constant 0 : i32
    return %c0_i32, %c0_i32_0 : i32, i32
  }
  func.func @transform_10(%arg0: i32) -> (i32, i32) {
    %c0_i32 = arith.constant 0 : i32
    %c0_i32_0 = arith.constant 0 : i32
    %c0_i32_1 = arith.constant 0 : i32
    return %c0_i32, %c0_i32_0 : i32, i32
  }
  func.func @transform_11(%arg0: i32) -> (i32, i32) {
    %c0_i32 = arith.constant 0 : i32
    %c0_i32_0 = arith.constant 0 : i32
    %c0_i32_1 = arith.constant 0 : i32
    return %c0_i32, %c0_i32_0 : i32, i32
  }
  func.func @transform_12(%arg0: i32) -> (i32, i32) {
    %c0_i32 = arith.constant 0 : i32
    %c0_i32_0 = arith.constant 0 : i32
    %c0_i32_1 = arith.constant 0 : i32
    return %c0_i32, %c0_i32_0 : i32, i32
  }
  func.func @transform_13(%arg0: i32) -> (i32, i32) {
    %c0_i32 = arith.constant 0 : i32
    %c0_i32_0 = arith.constant 0 : i32
    %c0_i32_1 = arith.constant 0 : i32
    return %c0_i32, %c0_i32_0 : i32, i32
  }
  func.func @transform_14(%arg0: i32) -> (i32, i32) {
    %c0_i32 = arith.constant 0 : i32
    %c0_i32_0 = arith.constant 0 : i32
    %c0_i32_1 = arith.constant 0 : i32
    return %c0_i32, %c0_i32_0 : i32, i32
  }
  func.func @transform_15(%arg0: i32) -> (i32, i32) {
    %c0_i32 = arith.constant 0 : i32
    %c0_i32_0 = arith.constant 0 : i32
    %c0_i32_1 = arith.constant 0 : i32
    return %c0_i32, %c0_i32_0 : i32, i32
  }
  func.func @transform_16(%arg0: i32) -> (i32, i32) {
    %c0_i32 = arith.constant 0 : i32
    %c0_i32_0 = arith.constant 0 : i32
    %c0_i32_1 = arith.constant 0 : i32
    return %c0_i32, %c0_i32_0 : i32, i32
  }
  func.func @transform_17(%arg0: i32) -> (i32, i32) {
    %c0_i32 = arith.constant 0 : i32
    %c0_i32_0 = arith.constant 0 : i32
    %c0_i32_1 = arith.constant 0 : i32
    return %c0_i32, %c0_i32_0 : i32, i32
  }
  func.func @transform_18(%arg0: i32) -> (i32, i32) {
    %c0_i32 = arith.constant 0 : i32
    %c0_i32_0 = arith.constant 0 : i32
    %c0_i32_1 = arith.constant 0 : i32
    return %c0_i32, %c0_i32_0 : i32, i32
  }
  func.func @transform_19(%arg0: i32) -> (i32, i32) {
    %c0_i32 = arith.constant 0 : i32
    %c0_i32_0 = arith.constant 0 : i32
    %c0_i32_1 = arith.constant 0 : i32
    return %c0_i32, %c0_i32_0 : i32, i32
  }
  func.func @transform_20(%arg0: i32) -> (i32, i32) {
    %c0_i32 = arith.constant 0 : i32
    %c0_i32_0 = arith.constant 0 : i32
    %c0_i32_1 = arith.constant 0 : i32
    return %c0_i32, %c0_i32_0 : i32, i32
  }
  func.func @transform_21(%arg0: i32) -> (i32, i32, i32) {
    %c0_i32 = arith.constant 0 : i32
    %c0_i32_0 = arith.constant 0 : i32
    %c0_i32_1 = arith.constant 0 : i32
    return %arg0, %c0_i32, %c0_i32_0 : i32, i32, i32
  }
}

module attributes {stable_mosaic.version = 11 : i64} {
  func.func @_linear_bias_kernel(%arg0: i32, %arg1: i32, %arg2: memref<16x32xbf16, #tpu.memory_space<vmem>>, %arg3: memref<32x16xbf16, #tpu.memory_space<vmem>>, %arg4: memref<1x16xf32, #tpu.memory_space<vmem>>, %arg5: memref<16x16xf32, #tpu.memory_space<vmem>>) attributes {dimension_semantics = [#tpu.dimension_semantics<parallel>, #tpu.dimension_semantics<parallel>], iteration_bounds = array<i64: 1, 1>, scalar_prefetch = 0 : i64, scratch_operands = 0 : i64, tpu.core_type = #tpu.core_type<tc>, window_params = [{transform_indices = @transform_0, window_bounds = array<i64: 16, 32>}, {transform_indices = @transform_1, window_bounds = array<i64: 32, 16>}, {transform_indices = @transform_2, window_bounds = array<i64: 1, 16>}, {transform_indices = @transform_3, window_bounds = array<i64: 16, 16>}]} {
    %c0 = arith.constant 0 : index
    %c0_0 = arith.constant 0 : index
    %0 = vector.load %arg2[%c0, %c0_0] : memref<16x32xbf16, #tpu.memory_space<vmem>>, vector<16x32xbf16>
    %c0_1 = arith.constant 0 : index
    %c0_2 = arith.constant 0 : index
    %1 = vector.load %arg3[%c0_1, %c0_2] : memref<32x16xbf16, #tpu.memory_space<vmem>>, vector<32x16xbf16>
    %cst = arith.constant dense<0.000000e+00> : vector<16x16xf32>
    %2 = tpu.matmul %0, %1, %cst {dimension_numbers = #tpu.dot_dimension_numbers<[1], [0], [0], [1], [0, 0, 1, 1], [], []>} : vector<16x32xbf16>, vector<32x16xbf16>, vector<16x16xf32> -> vector<16x16xf32>
    %c0_3 = arith.constant 0 : index
    %c0_4 = arith.constant 0 : index
    %3 = vector.load %arg4[%c0_3, %c0_4] : memref<1x16xf32, #tpu.memory_space<vmem>>, vector<1x16xf32>
    %4 = vector.broadcast %3 : vector<1x16xf32> to vector<16x16xf32>
    %5 = arith.addf %2, %4 : vector<16x16xf32>
    %c0_5 = arith.constant 0 : index
    %c0_6 = arith.constant 0 : index
    %6 = vector.load %arg5[%c0_5, %c0_6] : memref<16x16xf32, #tpu.memory_space<vmem>>, vector<16x16xf32>
    tpu.vector_store %arg5[%c0_5, %c0_6], %5 {strides = array<i32>} : memref<16x16xf32, #tpu.memory_space<vmem>>, vector<16x16xf32>,
    return
  }
  func.func @transform_0(%arg0: i32, %arg1: i32) -> (i32, i32) {
    %c0_i32 = arith.constant 0 : i32
    %c0_i32_0 = arith.constant 0 : i32
    return %arg0, %c0_i32 : i32, i32
  }
  func.func @transform_1(%arg0: i32, %arg1: i32) -> (i32, i32) {
    %c0_i32 = arith.constant 0 : i32
    %c0_i32_0 = arith.constant 0 : i32
    return %c0_i32, %arg1 : i32, i32
  }
  func.func @transform_2(%arg0: i32, %arg1: i32) -> (i32, i32) {
    %c0_i32 = arith.constant 0 : i32
    %c0_i32_0 = arith.constant 0 : i32
    return %c0_i32, %arg1 : i32, i32
  }
  func.func @transform_3(%arg0: i32, %arg1: i32) -> (i32, i32) {
    %c0_i32 = arith.constant 0 : i32
    return %arg0, %arg1 : i32, i32
  }
}

</mosaic_0001>

<llo_original>
// kernel: decoder_forward.5
$region0: #{decoder_forward.5}
  #allocation0 [shape = 'u32[]', space=smem, size = 0x4, offset = 0x4, fixed_abs, tag = 'smem constant byte address 0x4 - core index']
  #allocation1 [shape = 'u32[72,128]{1,0:T(1,128)}', space=vmem, size = 0x9000, scoped, tag = 'internal scratch']
  %s0 = inlined_call_operand.vmem [shape: bf16[16,32], index: 0, kind: input, shape index: {}]
  %s1 = inlined_call_operand.vmem [shape: bf16[32,16], index: 1, kind: input, shape index: {}]
  %s2 = inlined_call_operand.vmem [shape: f32[1,16], index: 2, kind: input, shape index: {}]
  %s3 = inlined_call_operand.hbm [shape: f32[16,16], index: 3, kind: output, shape index: {}]
  %s4 = sld [smem:[#allocation0]]
  $region22: #{decoder_forward.5} parent=0
    _
  %s6 = ssub.s32 1, %s4
  %s7 = scalar_select 0, %s6, %s4
  $region1: #{decoder_forward.5} parent=0
    #allocation2 [shape = 'u8[8192]{0}', space=vmem, size = 0x2000, scoped, tag = 'output window, operand 0, single buffered']
    #allocation3 [shape = 's32[1]{0}', space=sflag, size = 0x4, scoped, tag = 'scoped memory for decoder_forward.5']
    %8 = vsyncpa [#allocation3], 0
    // Predicated region
    $region2: #{decoder_forward.5} parent=1 // pred_check
      _
    $region3: #{decoder_forward.5} parent=1 // pred_check_branch
      %10 = sbr.rel (0) target = $region5
    $region4: #{decoder_forward.5} parent=1 // pred_region
      _
    $region5: #{decoder_forward.5} parent=1 // pred_fallthru
      _
    // Predicated region
    $region6: #{decoder_forward.5} parent=1 // pred_check
      _
    $region7: #{decoder_forward.5} parent=1 // pred_check_branch
      %12 = sbr.rel (0) target = $region9
    $region8: #{decoder_forward.5} parent=1 // pred_region
      _
    $region9: #{decoder_forward.5} parent=1 // pred_fallthru
      _
    // Predicated region
    $region10: #{decoder_forward.5} parent=1 // pred_check
      _
    $region11: #{decoder_forward.5} parent=1 // pred_check_branch
      %14 = sbr.rel (0) target = $region13
    $region12: #{decoder_forward.5} parent=1 // pred_region
      _
    $region13: #{decoder_forward.5} parent=1 // pred_fallthru
      _
    %v16 = vld [vmem:[%s0] sm:$0xf]
    %v17 = vld [vmem:[%s0 + $0x4] sm:$0xf]
    %v18 = vld [vmem:[%s1] sm:$0xf]
    %v19 = vld [vmem:[%s1 + $0x4] sm:$0xf]
    %v20 = vld [vmem:[%s1 + $0x8] sm:$0xf]
    %v21 = vld [vmem:[%s1 + $0xc] sm:$0xf]
    %v22 = vld [vmem:[%s2] sm:$0x1]
    %v24 = vperm.slane %v22, 0
    %v28 = vunpack.c.l.b16 %v16
    %v29 = vunpack.c.l.b16 %v17
    %v30 = vpack.c.b16 %v29, %v28
    %v35 = vunpack.c.l.b16 %v18
    %v36 = vunpack.c.l.b16 %v19
    %v37 = vunpack.c.l.b16 %v20
    %v38 = vunpack.c.l.b16 %v21
    %v39 = vpack.c.b16 %v36, %v35
    %v40 = vpack.c.b16 %v38, %v37
    %vm43 = vcmask 261120
    %v45 = vsel %vm43, %v30, 0
    %47 = vmatpush.bf16.msra.mxu0 0
    %48 = vmatpush.bf16.msra.mxu0 0
    %49 = vmatpush.bf16.msra.mxu0 0
    %50 = vmatpush.bf16.msra.mxu0 0
    %51 = vmatpush.bf16.msra.mxu0 0
    %52 = vmatpush.bf16.msra.mxu0 0
    %53 = vmatpush.bf16.msra.mxu0 %v40
    %54 = vmatpush.bf16.msra.mxu0 %v39
    %55 = vmatmul.bf16.gmra.mxu0 %v45
    %v56 = vpop.f32.mrf.mxu0
    %v57 = vadd.f32 %v24, %v56
    %v58 = vpop.f32.mrf.mxu0
    %v59 = vadd.f32 %v24, %v58
    %60 = vdwg.mxu0
    %vm61 = vcmask 130048
    %62 = vst.msk [vmem:[#allocation2] sm:$0xff] %vm61, %v57
    %63 = vst.msk [vmem:[#allocation2 + $0x8] sm:$0xff] %vm61, %v59
    // Predicated region
    $region14: #{decoder_forward.5} parent=1 // pred_check
      _
    $region15: #{decoder_forward.5} parent=1 // pred_check_branch
      %65 = sbr.rel (0) target = $region17
    $region16: #{decoder_forward.5} parent=1 // pred_region
      %67 = vsyncadd [#allocation3], 0
      %s68 = sshll.u32 [#allocation2], 4
      %s69 = int_to_ptr.vmem [resolvable:$true] %s68
      %s70 = sshll.u32 %s3, 4
      %s71 = int_to_ptr.hbm [resolvable:$true] %s70
      %76 = dma.vmem_to_hbm [thread:$0]  %s69, 256, %s71, [#allocation3], 128, 128, 8
    $region17: #{decoder_forward.5} parent=1 // pred_fallthru
      _
    // Predicated region
    $region18: #{decoder_forward.5} parent=1 // pred_check
      _
    $region19: #{decoder_forward.5} parent=1 // pred_check_branch
      %78 = sbr.rel (0) target = $region21
    $region20: #{decoder_forward.5} parent=1 // pred_region
      %80 = dma.done [#allocation3], 256
    $region21: #{decoder_forward.5} parent=1 // pred_fallthru
      _
    %81 = vsyncpa [#allocation3], 1

// kernel: decoder_forward.3
$region0: #{decoder_forward.3}
  #allocation0 [shape = 'u32[]', space=smem, size = 0x4, offset = 0x4, fixed_abs, tag = 'smem constant byte address 0x4 - core index']
  #allocation1 [shape = 'u32[72,128]{1,0:T(1,128)}', space=vmem, size = 0x9000, scoped, tag = 'internal scratch']
  #allocation2 [shape = 'f32[8,32]{1,0:T(8,128)}', space=vmem, size = 0x1000, scoped, tag = 'scratch operand']
  %s0 = inlined_call_operand.vmem [shape: bf16[2,8,32], index: 0, kind: input, shape index: {}]
  %s1 = inlined_call_operand.vmem [shape: bf16[2,8,32], index: 1, kind: input, shape index: {}]
  %s2 = inlined_call_operand.vmem [shape: f32[8,8], index: 2, kind: input, shape index: {}]
  %s3 = inlined_call_operand.vmem [shape: f32[8,8], index: 3, kind: input, shape index: {}]
  %s4 = inlined_call_operand.vmem [shape: bf16[32,96], index: 4, kind: input, shape index: {}]
  %s5 = inlined_call_operand.vmem [shape: bf16[32,32], index: 5, kind: input, shape index: {}]
  %s6 = inlined_call_operand.vmem [shape: f32[1,32], index: 6, kind: input, shape index: {}]
  %s7 = inlined_call_operand.vmem [shape: f32[1,32], index: 7, kind: input, shape index: {}]
  %s8 = inlined_call_operand.vmem [shape: f32[1,32], index: 8, kind: input, shape index: {}]
  %s9 = inlined_call_operand.vmem [shape: bf16[32,32], index: 9, kind: input, shape index: {}]
  %s10 = inlined_call_operand.vmem [shape: bf16[32,64], index: 10, kind: input, shape index: {}]
  %s11 = inlined_call_operand.vmem [shape: bf16[32,32], index: 11, kind: input, shape index: {}]
  %s12 = inlined_call_operand.vmem [shape: f32[1,32], index: 12, kind: input, shape index: {}]
  %s13 = inlined_call_operand.vmem [shape: f32[1,32], index: 13, kind: input, shape index: {}]
  %s14 = inlined_call_operand.vmem [shape: f32[1,32], index: 14, kind: input, shape index: {}]
  %s15 = inlined_call_operand.vmem [shape: bf16[32,64], index: 15, kind: input, shape index: {}]
  %s16 = inlined_call_operand.vmem [shape: f32[1,64], index: 16, kind: input, shape index: {}]
  %s17 = inlined_call_operand.vmem [shape: bf16[64,32], index: 17, kind: input, shape index: {}]
  %s18 = inlined_call_operand.vmem [shape: f32[1,32], index: 18, kind: input, shape index: {}]
  %s19 = inlined_call_operand.vmem [shape: f32[1,32], index: 19, kind: input, shape index: {}]
  %s20 = inlined_call_operand.vmem [shape: f32[1,32], index: 20, kind: input, shape index: {}]
  %s21 = inlined_call_operand.vmem [shape: bf16[2,8,32], index: 21, kind: output, shape index: {}]
  %s22 = sld [smem:[#allocation0]]
  $region117: #{decoder_forward.3} parent=0
    _
  %s24 = ssub.s32 1, %s22
  %s25 = scalar_select 0, %s24, %s22
  loop: start=0, step=1, limit=4
  $region2: #{decoder_forward.3} parent=0 // loop_pre_header
    _
  $region3: #{decoder_forward.3} parent=0 // loop_header
    %s27 = sphi 0, %s31
    %p28 = scmp.ge.s32.totalorder %s27, 4
    %s37 = sphi 0, %s39
    %s40 = sphi 0, %s37
    %s41 = sphi 0, %s40
    %s57 = sphi 0, %s41
    %s63 = sphi 0, %s65
    %s66 = sphi 0, %s63
    %s67 = sphi 0, %s66
    %s83 = sphi 0, %s67
    %s87 = sphi 0, %s87
    %s89 = sphi 0, %s87
    %s90 = sphi 0, %s89
    %s104 = sphi 0, %s90
    %s108 = sphi 0, %s108
    %s110 = sphi 0, %s108
    %s111 = sphi 0, %s110
    %s125 = sphi 0, %s111
    %s129 = sphi 0, %s129
    %s131 = sphi 0, %s129
    %s132 = sphi 0, %s131
    %s146 = sphi 0, %s132
    %s150 = sphi 0, %s150
    %s152 = sphi 0, %s150
    %s153 = sphi 0, %s152
    %s167 = sphi 0, %s153
    %s171 = sphi 0, %s171
    %s173 = sphi 0, %s171
    %s174 = sphi 0, %s173
    %s188 = sphi 0, %s174
    %s192 = sphi 0, %s192
    %s194 = sphi 0, %s192
    %s195 = sphi 0, %s194
    %s209 = sphi 0, %s195
    %s213 = sphi 0, %s213
    %s215 = sphi 0, %s213
    %s216 = sphi 0, %s215
    %s230 = sphi 0, %s216
    %s234 = sphi 0, %s234
    %s236 = sphi 0, %s234
    %s237 = sphi 0, %s236
    %s251 = sphi 0, %s237
    %s255 = sphi 0, %s255
    %s257 = sphi 0, %s255
    %s258 = sphi 0, %s257
    %s272 = sphi 0, %s258
    %s276 = sphi 0, %s276
    %s278 = sphi 0, %s276
    %s279 = sphi 0, %s278
    %s293 = sphi 0, %s279
    %s297 = sphi 0, %s297
    %s299 = sphi 0, %s297
    %s300 = sphi 0, %s299
    %s314 = sphi 0, %s300
    %s318 = sphi 0, %s318
    %s320 = sphi 0, %s318
    %s321 = sphi 0, %s320
    %s335 = sphi 0, %s321
    %s339 = sphi 0, %s339
    %s341 = sphi 0, %s339
    %s342 = sphi 0, %s341
    %s356 = sphi 0, %s342
    %s360 = sphi 0, %s360
    %s362 = sphi 0, %s360
    %s363 = sphi 0, %s362
    %s377 = sphi 0, %s363
    %s381 = sphi 0, %s381
    %s383 = sphi 0, %s381
    %s384 = sphi 0, %s383
    %s398 = sphi 0, %s384
    %s402 = sphi 0, %s402
    %s404 = sphi 0, %s402
    %s405 = sphi 0, %s404
    %s419 = sphi 0, %s405
    %s423 = sphi 0, %s423
    %s425 = sphi 0, %s423
    %s426 = sphi 0, %s425
    %s440 = sphi 0, %s426
    %s444 = sphi 0, %s444
    %s446 = sphi 0, %s444
    %s447 = sphi 0, %s446
    %s461 = sphi 0, %s447
    %s465 = sphi 0, %s465
    %s467 = sphi 0, %s465
    %s468 = sphi 0, %s467
    %s482 = sphi 0, %s468
    %s488 = sphi 0, %s490
    %s491 = sphi 0, %s488
    %s492 = sphi 0, %s491
    %s508 = sphi 0, %s492
  $region4: #{decoder_forward.3} parent=0 // loop_header_branch
    %30 = sbr.rel (%p28) target = $region8
  $region5: #{decoder_forward.3} parent=0 // loop_body
    %s32 = ssub.s32 %s27, 1
    %s33 = ssub.s32 %s27, 2
    %s34 = sadd.s32 %s27, 1
    %s35 = ssub.s32 %s27, %s34
    %p36 = scmp.eq.s32.totalorder %s35, 0
    %s38 = sadd.s32 %s37, 1
    %s39 = scalar_select %p36, %s37, %s38
    %p42 = pneg %p36
    %p43 = scmp.eq.s32.totalorder %s27, 1
    %p44 = por %p42, %p43
    %p45 = scmp.ne.s32.totalorder %s37, %s40
    %p46 = scmp.eq.s32.totalorder %s27, 0
    %p47 = por %p45, %p46
    %p48 = scmp.ne.s32.totalorder %s37, %s40
    %p49 = scmp.eq.s32.totalorder %s32, 1
    %p50 = por %p48, %p49
    %p51 = scmp.ne.s32.totalorder %s40, %s41
    %p52 = scmp.eq.s32.totalorder %s32, 0
    %p53 = por %p51, %p52
    %p54 = scmp.ne.s32.totalorder %s40, %s41
    %p55 = scmp.eq.s32.totalorder %s33, 1
    %p56 = por %p54, %p55
    %p58 = scmp.ne.s32.totalorder %s41, %s57
    %p59 = scmp.eq.s32.totalorder %s33, 0
    %p60 = por %p58, %p59
    %s61 = ssub.s32 %s27, %s34
    %p62 = scmp.eq.s32.totalorder %s61, 0
    %s64 = sadd.s32 %s63, 1
    %s65 = scalar_select %p62, %s63, %s64
    %p68 = pneg %p62
    %p69 = scmp.eq.s32.totalorder %s27, 1
    %p70 = por %p68, %p69
    %p71 = scmp.ne.s32.totalorder %s63, %s66
    %p72 = scmp.eq.s32.totalorder %s27, 0
    %p73 = por %p71, %p72
    %p74 = scmp.ne.s32.totalorder %s63, %s66
    %p75 = scmp.eq.s32.totalorder %s32, 1
    %p76 = por %p74, %p75
    %p77 = scmp.ne.s32.totalorder %s66, %s67
    %p78 = scmp.eq.s32.totalorder %s32, 0
    %p79 = por %p77, %p78
    %p80 = scmp.ne.s32.totalorder %s66, %s67
    %p81 = scmp.eq.s32.totalorder %s33, 1
    %p82 = por %p80, %p81
    %p84 = scmp.ne.s32.totalorder %s67, %s83
    %p85 = scmp.eq.s32.totalorder %s33, 0
    %p86 = por %p84, %p85
    %s88 = sadd.s32 %s87, 1
    %p91 = scmp.eq.s32.totalorder %s27, 1
    %p92 = scmp.ne.s32.totalorder %s87, %s89
    %p93 = scmp.eq.s32.totalorder %s27, 0
    %p94 = por %p92, %p93
    %p95 = scmp.ne.s32.totalorder %s87, %s89
    %p96 = scmp.eq.s32.totalorder %s32, 1
    %p97 = por %p95, %p96
    %p98 = scmp.ne.s32.totalorder %s89, %s90
    %p99 = scmp.eq.s32.totalorder %s32, 0
    %p100 = por %p98, %p99
    %p101 = scmp.ne.s32.totalorder %s89, %s90
    %p102 = scmp.eq.s32.totalorder %s33, 1
    %p103 = por %p101, %p102
    %p105 = scmp.ne.s32.totalorder %s90, %s104
    %p106 = scmp.eq.s32.totalorder %s33, 0
    %p107 = por %p105, %p106
    %s109 = sadd.s32 %s108, 1
    %p112 = scmp.eq.s32.totalorder %s27, 1
    %p113 = scmp.ne.s32.totalorder %s108, %s110
    %p114 = scmp.eq.s32.totalorder %s27, 0
    %p115 = por %p113, %p114
    %p116 = scmp.ne.s32.totalorder %s108, %s110
    %p117 = scmp.eq.s32.totalorder %s32, 1
    %p118 = por %p116, %p117
    %p119 = scmp.ne.s32.totalorder %s110, %s111
    %p120 = scmp.eq.s32.totalorder %s32, 0
    %p121 = por %p119, %p120
    %p122 = scmp.ne.s32.totalorder %s110, %s111
    %p123 = scmp.eq.s32.totalorder %s33, 1
    %p124 = por %p122, %p123
    %p126 = scmp.ne.s32.totalorder %s111, %s125
    %p127 = scmp.eq.s32.totalorder %s33, 0
    %p128 = por %p126, %p127
    %s130 = sadd.s32 %s129, 1
    %p133 = scmp.eq.s32.totalorder %s27, 1
    %p134 = scmp.ne.s32.totalorder %s129, %s131
    %p135 = scmp.eq.s32.totalorder %s27, 0
    %p136 = por %p134, %p135
    %p137 = scmp.ne.s32.totalorder %s129, %s131
    %p138 = scmp.eq.s32.totalorder %s32, 1
    %p139 = por %p137, %p138
    %p140 = scmp.ne.s32.totalorder %s131, %s132
    %p141 = scmp.eq.s32.totalorder %s32, 0
    %p142 = por %p140, %p141
    %p143 = scmp.ne.s32.totalorder %s131, %s132
    %p144 = scmp.eq.s32.totalorder %s33, 1
    %p145 = por %p143, %p144
    %p147 = scmp.ne.s32.totalorder %s132, %s146
    %p148 = scmp.eq.s32.totalorder %s33, 0
    %p149 = por %p147, %p148
    %s151 = sadd.s32 %s150, 1
    %p154 = scmp.eq.s32.totalorder %s27, 1
    %p155 = scmp.ne.s32.totalorder %s150, %s152
    %p156 = scmp.eq.s32.totalorder %s27, 0
    %p157 = por %p155, %p156
    %p158 = scmp.ne.s32.totalorder %s150, %s152
    %p159 = scmp.eq.s32.totalorder %s32, 1
    %p160 = por %p158, %p159
    %p161 = scmp.ne.s32.totalorder %s152, %s153
    %p162 = scmp.eq.s32.totalorder %s32, 0
    %p163 = por %p161, %p162
    %p164 = scmp.ne.s32.totalorder %s152, %s153
    %p165 = scmp.eq.s32.totalorder %s33, 1
    %p166 = por %p164, %p165
    %p168 = scmp.ne.s32.totalorder %s153, %s167
    %p169 = scmp.eq.s32.totalorder %s33, 0
    %p170 = por %p168, %p169
    %s172 = sadd.s32 %s171, 1
    %p175 = scmp.eq.s32.totalorder %s27, 1
    %p176 = scmp.ne.s32.totalorder %s171, %s173
    %p177 = scmp.eq.s32.totalorder %s27, 0
    %p178 = por %p176, %p177
    %p179 = scmp.ne.s32.totalorder %s171, %s173
    %p180 = scmp.eq.s32.totalorder %s32, 1
    %p181 = por %p179, %p180
    %p182 = scmp.ne.s32.totalorder %s173, %s174
    %p183 = scmp.eq.s32.totalorder %s32, 0
    %p184 = por %p182, %p183
    %p185 = scmp.ne.s32.totalorder %s173, %s174
    %p186 = scmp.eq.s32.totalorder %s33, 1
    %p187 = por %p185, %p186
    %p189 = scmp.ne.s32.totalorder %s174, %s188
    %p190 = scmp.eq.s32.totalorder %s33, 0
    %p191 = por %p189, %p190
    %s193 = sadd.s32 %s192, 1
    %p196 = scmp.eq.s32.totalorder %s27, 1
    %p197 = scmp.ne.s32.totalorder %s192, %s194
    %p198 = scmp.eq.s32.totalorder %s27, 0
    %p199 = por %p197, %p198
    %p200 = scmp.ne.s32.totalorder %s192, %s194
    %p201 = scmp.eq.s32.totalorder %s32, 1
    %p202 = por %p200, %p201
    %p203 = scmp.ne.s32.totalorder %s194, %s195
    %p204 = scmp.eq.s32.totalorder %s32, 0
    %p205 = por %p203, %p204
    %p206 = scmp.ne.s32.totalorder %s194, %s195
    %p207 = scmp.eq.s32.totalorder %s33, 1
    %p208 = por %p206, %p207
    %p210 = scmp.ne.s32.totalorder %s195, %s209
    %p211 = scmp.eq.s32.totalorder %s33, 0
    %p212 = por %p210, %p211
    %s214 = sadd.s32 %s213, 1
    %p217 = scmp.eq.s32.totalorder %s27, 1
    %p218 = scmp.ne.s32.totalorder %s213, %s215
    %p219 = scmp.eq.s32.totalorder %s27, 0
    %p220 = por %p218, %p219
    %p221 = scmp.ne.s32.totalorder %s213, %s215
    %p222 = scmp.eq.s32.totalorder %s32, 1
    %p223 = por %p221, %p222
    %p224 = scmp.ne.s32.totalorder %s215, %s216
    %p225 = scmp.eq.s32.totalorder %s32, 0
    %p226 = por %p224, %p225
    %p227 = scmp.ne.s32.totalorder %s215, %s216
    %p228 = scmp.eq.s32.totalorder %s33, 1
    %p229 = por %p227, %p228
    %p231 = scmp.ne.s32.totalorder %s216, %s230
    %p232 = scmp.eq.s32.totalorder %s33, 0
    %p233 = por %p231, %p232
    %s235 = sadd.s32 %s234, 1
    %p238 = scmp.eq.s32.totalorder %s27, 1
    %p239 = scmp.ne.s32.totalorder %s234, %s236
    %p240 = scmp.eq.s32.totalorder %s27, 0
    %p241 = por %p239, %p240
    %p242 = scmp.ne.s32.totalorder %s234, %s236
    %p243 = scmp.eq.s32.totalorder %s32, 1
    %p244 = por %p242, %p243
    %p245 = scmp.ne.s32.totalorder %s236, %s237
    %p246 = scmp.eq.s32.totalorder %s32, 0
    %p247 = por %p245, %p246
    %p248 = scmp.ne.s32.totalorder %s236, %s237
    %p249 = scmp.eq.s32.totalorder %s33, 1
    %p250 = por %p248, %p249
    %p252 = scmp.ne.s32.totalorder %s237, %s251
    %p253 = scmp.eq.s32.totalorder %s33, 0
    %p254 = por %p252, %p253
    %s256 = sadd.s32 %s255, 1
    %p259 = scmp.eq.s32.totalorder %s27, 1
    %p260 = scmp.ne.s32.totalorder %s255, %s257
    %p261 = scmp.eq.s32.totalorder %s27, 0
    %p262 = por %p260, %p261
    %p263 = scmp.ne.s32.totalorder %s255, %s257
    %p264 = scmp.eq.s32.totalorder %s32, 1
    %p265 = por %p263, %p264
    %p266 = scmp.ne.s32.totalorder %s257, %s258
    %p267 = scmp.eq.s32.totalorder %s32, 0
    %p268 = por %p266, %p267
    %p269 = scmp.ne.s32.totalorder %s257, %s258
    %p270 = scmp.eq.s32.totalorder %s33, 1
    %p271 = por %p269, %p270
    %p273 = scmp.ne.s32.totalorder %s258, %s272
    %p274 = scmp.eq.s32.totalorder %s33, 0
    %p275 = por %p273, %p274
    %s277 = sadd.s32 %s276, 1
    %p280 = scmp.eq.s32.totalorder %s27, 1
    %p281 = scmp.ne.s32.totalorder %s276, %s278
    %p282 = scmp.eq.s32.totalorder %s27, 0
    %p283 = por %p281, %p282
    %p284 = scmp.ne.s32.totalorder %s276, %s278
    %p285 = scmp.eq.s32.totalorder %s32, 1
    %p286 = por %p284, %p285
    %p287 = scmp.ne.s32.totalorder %s278, %s279
    %p288 = scmp.eq.s32.totalorder %s32, 0
    %p289 = por %p287, %p288
    %p290 = scmp.ne.s32.totalorder %s278, %s279
    %p291 = scmp.eq.s32.totalorder %s33, 1
    %p292 = por %p290, %p291
    %p294 = scmp.ne.s32.totalorder %s279, %s293
    %p295 = scmp.eq.s32.totalorder %s33, 0
    %p296 = por %p294, %p295
    %s298 = sadd.s32 %s297, 1
    %p301 = scmp.eq.s32.totalorder %s27, 1
    %p302 = scmp.ne.s32.totalorder %s297, %s299
    %p303 = scmp.eq.s32.totalorder %s27, 0
    %p304 = por %p302, %p303
    %p305 = scmp.ne.s32.totalorder %s297, %s299
    %p306 = scmp.eq.s32.totalorder %s32, 1
    %p307 = por %p305, %p306
    %p308 = scmp.ne.s32.totalorder %s299, %s300
    %p309 = scmp.eq.s32.totalorder %s32, 0
    %p310 = por %p308, %p309
    %p311 = scmp.ne.s32.totalorder %s299, %s300
    %p312 = scmp.eq.s32.totalorder %s33, 1
    %p313 = por %p311, %p312
    %p315 = scmp.ne.s32.totalorder %s300, %s314
    %p316 = scmp.eq.s32.totalorder %s33, 0
    %p317 = por %p315, %p316
    %s319 = sadd.s32 %s318, 1
    %p322 = scmp.eq.s32.totalorder %s27, 1
    %p323 = scmp.ne.s32.totalorder %s318, %s320
    %p324 = scmp.eq.s32.totalorder %s27, 0
    %p325 = por %p323, %p324
    %p326 = scmp.ne.s32.totalorder %s318, %s320
    %p327 = scmp.eq.s32.totalorder %s32, 1
    %p328 = por %p326, %p327
    %p329 = scmp.ne.s32.totalorder %s320, %s321
    %p330 = scmp.eq.s32.totalorder %s32, 0
    %p331 = por %p329, %p330
    %p332 = scmp.ne.s32.totalorder %s320, %s321
    %p333 = scmp.eq.s32.totalorder %s33, 1
    %p334 = por %p332, %p333
    %p336 = scmp.ne.s32.totalorder %s321, %s335
    %p337 = scmp.eq.s32.totalorder %s33, 0
    %p338 = por %p336, %p337
    %s340 = sadd.s32 %s339, 1
    %p343 = scmp.eq.s32.totalorder %s27, 1
    %p344 = scmp.ne.s32.totalorder %s339, %s341
    %p345 = scmp.eq.s32.totalorder %s27, 0
    %p346 = por %p344, %p345
    %p347 = scmp.ne.s32.totalorder %s339, %s341
    %p348 = scmp.eq.s32.totalorder %s32, 1
    %p349 = por %p347, %p348
    %p350 = scmp.ne.s32.totalorder %s341, %s342
    %p351 = scmp.eq.s32.totalorder %s32, 0
    %p352 = por %p350, %p351
    %p353 = scmp.ne.s32.totalorder %s341, %s342
    %p354 = scmp.eq.s32.totalorder %s33, 1
    %p355 = por %p353, %p354
    %p357 = scmp.ne.s32.totalorder %s342, %s356
    %p358 = scmp.eq.s32.totalorder %s33, 0
    %p359 = por %p357, %p358
    %s361 = sadd.s32 %s360, 1
    %p364 = scmp.eq.s32.totalorder %s27, 1
    %p365 = scmp.ne.s32.totalorder %s360, %s362
    %p366 = scmp.eq.s32.totalorder %s27, 0
    %p367 = por %p365, %p366
    %p368 = scmp.ne.s32.totalorder %s360, %s362
    %p369 = scmp.eq.s32.totalorder %s32, 1
    %p370 = por %p368, %p369
    %p371 = scmp.ne.s32.totalorder %s362, %s363
    %p372 = scmp.eq.s32.totalorder %s32, 0
    %p373 = por %p371, %p372
    %p374 = scmp.ne.s32.totalorder %s362, %s363
    %p375 = scmp.eq.s32.totalorder %s33, 1
    %p376 = por %p374, %p375
    %p378 = scmp.ne.s32.totalorder %s363, %s377
    %p379 = scmp.eq.s32.totalorder %s33, 0
    %p380 = por %p378, %p379
    %s382 = sadd.s32 %s381, 1
    %p385 = scmp.eq.s32.totalorder %s27, 1
    %p386 = scmp.ne.s32.totalorder %s381, %s383
    %p387 = scmp.eq.s32.totalorder %s27, 0
    %p388 = por %p386, %p387
    %p389 = scmp.ne.s32.totalorder %s381, %s383
    %p390 = scmp.eq.s32.totalorder %s32, 1
    %p391 = por %p389, %p390
    %p392 = scmp.ne.s32.totalorder %s383, %s384
    %p393 = scmp.eq.s32.totalorder %s32, 0
    %p394 = por %p392, %p393
    %p395 = scmp.ne.s32.totalorder %s383, %s384
    %p396 = scmp.eq.s32.totalorder %s33, 1
    %p397 = por %p395, %p396
    %p399 = scmp.ne.s32.totalorder %s384, %s398
    %p400 = scmp.eq.s32.totalorder %s33, 0
    %p401 = por %p399, %p400
    %s403 = sadd.s32 %s402, 1
    %p406 = scmp.eq.s32.totalorder %s27, 1
    %p407 = scmp.ne.s32.totalorder %s402, %s404
    %p408 = scmp.eq.s32.totalorder %s27, 0
    %p409 = por %p407, %p408
    %p410 = scmp.ne.s32.totalorder %s402, %s404
    %p411 = scmp.eq.s32.totalorder %s32, 1
    %p412 = por %p410, %p411
    %p413 = scmp.ne.s32.totalorder %s404, %s405
    %p414 = scmp.eq.s32.totalorder %s32, 0
    %p415 = por %p413, %p414
    %p416 = scmp.ne.s32.totalorder %s404, %s405
    %p417 = scmp.eq.s32.totalorder %s33, 1
    %p418 = por %p416, %p417
    %p420 = scmp.ne.s32.totalorder %s405, %s419
    %p421 = scmp.eq.s32.totalorder %s33, 0
    %p422 = por %p420, %p421
    %s424 = sadd.s32 %s423, 1
    %p427 = scmp.eq.s32.totalorder %s27, 1
    %p428 = scmp.ne.s32.totalorder %s423, %s425
    %p429 = scmp.eq.s32.totalorder %s27, 0
    %p430 = por %p428, %p429
    %p431 = scmp.ne.s32.totalorder %s423, %s425
    %p432 = scmp.eq.s32.totalorder %s32, 1
    %p433 = por %p431, %p432
    %p434 = scmp.ne.s32.totalorder %s425, %s426
    %p435 = scmp.eq.s32.totalorder %s32, 0
    %p436 = por %p434, %p435
    %p437 = scmp.ne.s32.totalorder %s425, %s426
    %p438 = scmp.eq.s32.totalorder %s33, 1
    %p439 = por %p437, %p438
    %p441 = scmp.ne.s32.totalorder %s426, %s440
    %p442 = scmp.eq.s32.totalorder %s33, 0
    %p443 = por %p441, %p442
    %s445 = sadd.s32 %s444, 1
    %p448 = scmp.eq.s32.totalorder %s27, 1
    %p449 = scmp.ne.s32.totalorder %s444, %s446
    %p450 = scmp.eq.s32.totalorder %s27, 0
    %p451 = por %p449, %p450
    %p452 = scmp.ne.s32.totalorder %s444, %s446
    %p453 = scmp.eq.s32.totalorder %s32, 1
    %p454 = por %p452, %p453
    %p455 = scmp.ne.s32.totalorder %s446, %s447
    %p456 = scmp.eq.s32.totalorder %s32, 0
    %p457 = por %p455, %p456
    %p458 = scmp.ne.s32.totalorder %s446, %s447
    %p459 = scmp.eq.s32.totalorder %s33, 1
    %p460 = por %p458, %p459
    %p462 = scmp.ne.s32.totalorder %s447, %s461
    %p463 = scmp.eq.s32.totalorder %s33, 0
    %p464 = por %p462, %p463
    %s466 = sadd.s32 %s465, 1
    %p469 = scmp.eq.s32.totalorder %s27, 1
    %p470 = scmp.ne.s32.totalorder %s465, %s467
    %p471 = scmp.eq.s32.totalorder %s27, 0
    %p472 = por %p470, %p471
    %p473 = scmp.ne.s32.totalorder %s465, %s467
    %p474 = scmp.eq.s32.totalorder %s32, 1
    %p475 = por %p473, %p474
    %p476 = scmp.ne.s32.totalorder %s467, %s468
    %p477 = scmp.eq.s32.totalorder %s32, 0
    %p478 = por %p476, %p477
    %p479 = scmp.ne.s32.totalorder %s467, %s468
    %p480 = scmp.eq.s32.totalorder %s33, 1
    %p481 = por %p479, %p480
    %p483 = scmp.ne.s32.totalorder %s468, %s482
    %p484 = scmp.eq.s32.totalorder %s33, 0
    %p485 = por %p483, %p484
    %s486 = ssub.s32 %s27, %s34
    %p487 = scmp.eq.s32.totalorder %s486, 0
    %s489 = sadd.s32 %s488, 1
    %s490 = scalar_select %p487, %s488, %s489
    %p493 = pneg %p487
    %p494 = scmp.eq.s32.totalorder %s27, 1
    %p495 = por %p493, %p494
    %p496 = scmp.ne.s32.totalorder %s488, %s491
    %p497 = scmp.eq.s32.totalorder %s27, 0
    %p498 = por %p496, %p497
    %p499 = scmp.ne.s32.totalorder %s488, %s491
    %p500 = scmp.eq.s32.totalorder %s32, 1
    %p501 = por %p499, %p500
    %p502 = scmp.ne.s32.totalorder %s491, %s492
    %p503 = scmp.eq.s32.totalorder %s32, 0
    %p504 = por %p502, %p503
    %p505 = scmp.ne.s32.totalorder %s491, %s492
    %p506 = scmp.eq.s32.totalorder %s33, 1
    %p507 = por %p505, %p506
    %p509 = scmp.ne.s32.totalorder %s492, %s508
    %p510 = scmp.eq.s32.totalorder %s33, 0
    %p511 = por %p509, %p510
    %p512 = scmp.le.s32.totalorder 1, %s27
    %p513 = scmp.lt.s32.totalorder %s27, 3
    %p514 = pnand %p512, %p513
    %p515 = pneg %p514
    // Predicated region
    $region9: #{decoder_forward.3} parent=5 // pred_check
      _
    $region10: #{decoder_forward.3} parent=5 // pred_check_branch
      %517 = sbr.rel (%p514) target = $region12
    $region11: #{decoder_forward.3} parent=5 // pred_region
      %s518 = ssub.s32 %s27, 1
      // Predicated region
      $region13: #{decoder_forward.3} parent=11 // pred_check
        %p519 = pneg %p100
      $region14: #{decoder_forward.3} parent=11 // pred_check_branch
        %521 = sbr.rel (%p519) target = $region16
      $region15: #{decoder_forward.3} parent=11 // pred_region
        _
      $region16: #{decoder_forward.3} parent=11 // pred_fallthru
        _
      // Predicated region
      $region17: #{decoder_forward.3} parent=11 // pred_check
        %p522 = pneg %p121
      $region18: #{decoder_forward.3} parent=11 // pred_check_branch
        %524 = sbr.rel (%p522) target = $region20
      $region19: #{decoder_forward.3} parent=11 // pred_region
        _
      $region20: #{decoder_forward.3} parent=11 // pred_fallthru
        _
      // Predicated region
      $region21: #{decoder_forward.3} parent=11 // pred_check
        %p525 = pneg %p142
      $region22: #{decoder_forward.3} parent=11 // pred_check_branch
        %527 = sbr.rel (%p525) target = $region24
      $region23: #{decoder_forward.3} parent=11 // pred_region
        _
      $region24: #{decoder_forward.3} parent=11 // pred_fallthru
        _
      // Predicated region
      $region25: #{decoder_forward.3} parent=11 // pred_check
        %p528 = pneg %p163
      $region26: #{decoder_forward.3} parent=11 // pred_check_branch
        %530 = sbr.rel (%p528) target = $region28
      $region27: #{decoder_forward.3} parent=11 // pred_region
        _
      $region28: #{decoder_forward.3} parent=11 // pred_fallthru
        _
      // Predicated region
      $region29: #{decoder_forward.3} parent=11 // pred_check
        %p531 = pneg %p184
      $region30: #{decoder_forward.3} parent=11 // pred_check_branch
        %533 = sbr.rel (%p531) target = $region32
      $region31: #{decoder_forward.3} parent=11 // pred_region
        _
      $region32: #{decoder_forward.3} parent=11 // pred_fallthru
        _
      // Predicated region
      $region33: #{decoder_forward.3} parent=11 // pred_check
        %p534 = pneg %p205
      $region34: #{decoder_forward.3} parent=11 // pred_check_branch
        %536 = sbr.rel (%p534) target = $region36
      $region35: #{decoder_forward.3} parent=11 // pred_region
        _
      $region36: #{decoder_forward.3} parent=11 // pred_fallthru
        _
      // Predicated region
      $region37: #{decoder_forward.3} parent=11 // pred_check
        %p537 = pneg %p226
      $region38: #{decoder_forward.3} parent=11 // pred_check_branch
        %539 = sbr.rel (%p537) target = $region40
      $region39: #{decoder_forward.3} parent=11 // pred_region
        _
      $region40: #{decoder_forward.3} parent=11 // pred_fallthru
        _
      // Predicated region
      $region41: #{decoder_forward.3} parent=11 // pred_check
        %p540 = pneg %p247
      $region42: #{decoder_forward.3} parent=11 // pred_check_branch
        %542 = sbr.rel (%p540) target = $region44
      $region43: #{decoder_forward.3} parent=11 // pred_region
        _
      $region44: #{decoder_forward.3} parent=11 // pred_fallthru
        _
      // Predicated region
      $region45: #{decoder_forward.3} parent=11 // pred_check
        %p543 = pneg %p268
      $region46: #{decoder_forward.3} parent=11 // pred_check_branch
        %545 = sbr.rel (%p543) target = $region48
      $region47: #{decoder_forward.3} parent=11 // pred_region
        _
      $region48: #{decoder_forward.3} parent=11 // pred_fallthru
        _
      // Predicated region
      $region49: #{decoder_forward.3} parent=11 // pred_check
        %p546 = pneg %p289
      $region50: #{decoder_forward.3} parent=11 // pred_check_branch
        %548 = sbr.rel (%p546) target = $region52
      $region51: #{decoder_forward.3} parent=11 // pred_region
        _
      $region52: #{decoder_forward.3} parent=11 // pred_fallthru
        _
      // Predicated region
      $region53: #{decoder_forward.3} parent=11 // pred_check
        %p549 = pneg %p310
      $region54: #{decoder_forward.3} parent=11 // pred_check_branch
        %551 = sbr.rel (%p549) target = $region56
      $region55: #{decoder_forward.3} parent=11 // pred_region
        _
      $region56: #{decoder_forward.3} parent=11 // pred_fallthru
        _
      // Predicated region
      $region57: #{decoder_forward.3} parent=11 // pred_check
        %p552 = pneg %p331
      $region58: #{decoder_forward.3} parent=11 // pred_check_branch
        %554 = sbr.rel (%p552) target = $region60
      $region59: #{decoder_forward.3} parent=11 // pred_region
        _
      $region60: #{decoder_forward.3} parent=11 // pred_fallthru
        _
      // Predicated region
      $region61: #{decoder_forward.3} parent=11 // pred_check
        %p555 = pneg %p352
      $region62: #{decoder_forward.3} parent=11 // pred_check_branch
        %557 = sbr.rel (%p555) target = $region64
      $region63: #{decoder_forward.3} parent=11 // pred_region
        _
      $region64: #{decoder_forward.3} parent=11 // pred_fallthru
        _
      // Predicated region
      $region65: #{decoder_forward.3} parent=11 // pred_check
        %p558 = pneg %p373
      $region66: #{decoder_forward.3} parent=11 // pred_check_branch
        %560 = sbr.rel (%p558) target = $region68
      $region67: #{decoder_forward.3} parent=11 // pred_region
        _
      $region68: #{decoder_forward.3} parent=11 // pred_fallthru
        _
      // Predicated region
      $region69: #{decoder_forward.3} parent=11 // pred_check
        %p561 = pneg %p394
      $region70: #{decoder_forward.3} parent=11 // pred_check_branch
        %563 = sbr.rel (%p561) target = $region72
      $region71: #{decoder_forward.3} parent=11 // pred_region
        _
      $region72: #{decoder_forward.3} parent=11 // pred_fallthru
        _
      // Predicated region
      $region73: #{decoder_forward.3} parent=11 // pred_check
        %p564 = pneg %p415
      $region74: #{decoder_forward.3} parent=11 // pred_check_branch
        %566 = sbr.rel (%p564) target = $region76
      $region75: #{decoder_forward.3} parent=11 // pred_region
        _
      $region76: #{decoder_forward.3} parent=11 // pred_fallthru
        _
      // Predicated region
      $region77: #{decoder_forward.3} parent=11 // pred_check
        %p567 = pneg %p436
      $region78: #{decoder_forward.3} parent=11 // pred_check_branch
        %569 = sbr.rel (%p567) target = $region80
      $region79: #{decoder_forward.3} parent=11 // pred_region
        _
      $region80: #{decoder_forward.3} parent=11 // pred_fallthru
        _
      // Predicated region
      $region81: #{decoder_forward.3} parent=11 // pred_check
        %p570 = pneg %p457
      $region82: #{decoder_forward.3} parent=11 // pred_check_branch
        %572 = sbr.rel (%p570) target = $region84
      $region83: #{decoder_forward.3} parent=11 // pred_region
        _
      $region84: #{decoder_forward.3} parent=11 // pred_fallthru
        _
      // Predicated region
      $region85: #{decoder_forward.3} parent=11 // pred_check
        %p573 = pneg %p478
      $region86: #{decoder_forward.3} parent=11 // pred_check_branch
        %575 = sbr.rel (%p573) target = $region88
      $region87: #{decoder_forward.3} parent=11 // pred_region
        _
      $region88: #{decoder_forward.3} parent=11 // pred_fallthru
        _
    $region12: #{decoder_forward.3} parent=5 // pred_fallthru
      _
    %p576 = scmp.lt.s32.totalorder %s27, 2
    // Predicated region
    $region89: #{decoder_forward.3} parent=5 // pred_check
      %p577 = pneg %p576
    $region90: #{decoder_forward.3} parent=5 // pred_check_branch
      %579 = sbr.rel (%p577) target = $region92
    $region91: #{decoder_forward.3} parent=5 // pred_region
      // Predicated region
      $region93: #{decoder_forward.3} parent=91 // pred_check
        %p580 = pneg %p47
      $region94: #{decoder_forward.3} parent=91 // pred_check_branch
        %582 = sbr.rel (%p580) target = $region96
      $region95: #{decoder_forward.3} parent=91 // pred_region
        %p583 = scmp.lt.s32.totalorder %s27, 1
        %s584 = scalar_select %p583, %s27, 1
        %s585 = smul.addr %s584, 4
        %s586 = scalar_lea.vmem %s0, %s585
      $region96: #{decoder_forward.3} parent=91 // pred_fallthru
        _
      // Predicated region
      $region97: #{decoder_forward.3} parent=91 // pred_check
        %p587 = pneg %p73
      $region98: #{decoder_forward.3} parent=91 // pred_check_branch
        %589 = sbr.rel (%p587) target = $region100
      $region99: #{decoder_forward.3} parent=91 // pred_region
        %p590 = scmp.lt.s32.totalorder %s27, 1
        %s591 = scalar_select %p590, %s27, 1
        %s592 = smul.addr %s591, 4
        %s593 = scalar_lea.vmem %s1, %s592
      $region100: #{decoder_forward.3} parent=91 // pred_fallthru
        _
    $region92: #{decoder_forward.3} parent=5 // pred_fallthru
      _
    %p594 = scmp.le.s32.totalorder 1, %s27
    %p595 = scmp.lt.s32.totalorder %s27, 3
    %p596 = pnand %p594, %p595
    %p597 = pneg %p596
    // Predicated region
    $region101: #{decoder_forward.3} parent=5 // pred_check
      _
    $region102: #{decoder_forward.3} parent=5 // pred_check_branch
      %599 = sbr.rel (%p596) target = $region104
    $region103: #{decoder_forward.3} parent=5 // pred_region
      %s600 = ssub.s32 %s27, 1
      %p601 = scmp.lt.s32.totalorder %s32, 1
      %s602 = scalar_select %p601, %s32, 1
      %s603 = smul.addr %s602, 4
      %s604 = scalar_lea.vmem %s0, %s603
      %p605 = pneg %p53
      %p606 = pneg %p50
      %p607 = scmp.lt.s32.totalorder %s32, 1
      %s608 = scalar_select %p607, %s32, 1
      %s609 = smul.addr %s608, 4
      %s610 = scalar_lea.vmem %s1, %s609
      %p611 = pneg %p79
      %p612 = pneg %p76
      %p613 = pneg %p100
      %p614 = pneg %p97
      %p615 = pneg %p121
      %p616 = pneg %p118
      %p617 = pneg %p142
      %p618 = pneg %p139
      %p619 = pneg %p163
      %p620 = pneg %p160
      %p621 = pneg %p184
      %p622 = pneg %p181
      %p623 = pneg %p205
      %p624 = pneg %p202
      %p625 = pneg %p226
      %p626 = pneg %p223
      %p627 = pneg %p247
      %p628 = pneg %p244
      %p629 = pneg %p268
      %p630 = pneg %p265
      %p631 = pneg %p289
      %p632 = pneg %p286
      %p633 = pneg %p310
      %p634 = pneg %p307
      %p635 = pneg %p331
      %p636 = pneg %p328
      %p637 = pneg %p352
      %p638 = pneg %p349
      %p639 = pneg %p373
      %p640 = pneg %p370
      %p641 = pneg %p394
      %p642 = pneg %p391
      %p643 = pneg %p415
      %p644 = pneg %p412
      %p645 = pneg %p436
      %p646 = pneg %p433
      %p647 = pneg %p457
      %p648 = pneg %p454
      %p649 = pneg %p478
      %p650 = pneg %p475
      %p651 = pneg %p504
      %p652 = pneg %p501
      %p653 = scmp.lt.s32.totalorder %s32, 1
      %s654 = scalar_select %p653, %s32, 1
      %s655 = smul.addr %s654, 4
      %s656 = scalar_lea.vmem %s21, %s655
      %p657 = scmp.lt.s32.totalorder %s32, 1
      %s658 = scalar_select %p657, %s32, 1
      %s659 = smul.addr %s658, 4
      %s660 = scalar_lea.vmem %s0, %s659
      %p661 = scmp.lt.s32.totalorder %s32, 1
      %s662 = scalar_select %p661, %s32, 1
      %s663 = smul.addr %s662, 4
      %s664 = scalar_lea.vmem %s1, %s663
      %p665 = scmp.lt.s32.totalorder %s32, 1
      %s666 = scalar_select %p665, %s32, 1
      %s667 = smul.addr %s666, 4
      %s668 = scalar_lea.vmem %s21, %s667
      %v670 = vld [vmem:[%s660] sm:$0xf]
      %v671 = vld [vmem:[%s664] sm:$0xf]
      %v672 = vld [vmem:[%s4] sm:$0xf]
      %v673 = vld [vmem:[%s4 + $0x4] sm:$0xf]
      %v674 = vld [vmem:[%s4 + $0x8] sm:$0xf]
      %v675 = vld [vmem:[%s4 + $0xc] sm:$0xf]
      %v680 = vunpack.c.l.b16 %v672
      %v681 = vunpack.c.l.b16 %v673
      %v682 = vunpack.c.l.b16 %v674
      %v683 = vunpack.c.l.b16 %v675
      %v684 = vpack.c.b16 %v681, %v680
      %v685 = vpack.c.b16 %v683, %v682
      %vm688 = vcmask 261120
      %v690 = vsel %vm688, %v670, 0
      %692 = vmatpush.bf16.msra.mxu0 0
      %693 = vmatpush.bf16.msra.mxu0 0
      %694 = vmatpush.bf16.msra.mxu0 0
      %695 = vmatpush.bf16.msra.mxu0 0
      %696 = vmatpush.bf16.msra.mxu0 0
      %697 = vmatpush.bf16.msra.mxu0 0
      %698 = vmatpush.bf16.msra.mxu0 %v685
      %699 = vmatpush.bf16.msra.mxu0 %v684
      %700 = vmatmul.bf16.gmra.mxu0 %v690
      %v701 = vpop.f32.mrf.mxu0
      %v702 = vadd.f32 0.0, %v701
      %v703 = vpop.f32.mrf.mxu0
      %704 = vdwg.mxu0
      %v705 = vld [vmem:[%s2] sm:$0xff]
      %v706 = vpack.c.bf16 %v702, %v702
      %v708 = vunpack.c.l.b16 %v706
      %v709 = vpack.c.b16 %v708, %v708
      %710 = vrot.lane.b32.xlu0 %v709, 96
      %v711 = vpop.permute.xlu0 %710
      %vm712 = vcmask 64512
      %v714 = vsel %vm712, %v706, 0
      %v717 = vsel %vm712, %v711, 0
      %719 = vmatpush.bf16.xpose.msra.mxu0 0
      %720 = vmatpush.bf16.xpose.msra.mxu0 0
      %721 = vmatpush.bf16.xpose.msra.mxu0 0
      %722 = vmatpush.bf16.xpose.msra.mxu0 0
      %723 = vmatpush.bf16.xpose.msra.mxu0 0
      %724 = vmatpush.bf16.xpose.msra.mxu0 0
      %725 = vmatpush.bf16.xpose.msra.mxu0 0
      %726 = vmatpush.bf16.xpose.msra.mxu0 %v717
      %727 = vmatmul.bf16.gmra.mxu0 %v714
      %v728 = vpop.f32.mrf.mxu0
      %v729 = vadd.f32 %v705, %v728
      %v730 = vpop.f32.mrf.mxu0
      %731 = vdwg.mxu0
      %v732 = vmul.f32 %v729, 0.35355338
      %v733 = vsel %vm712, %v732, -inf
      %734 = vmax.xlane.f32.xlu0 %v733
      %v735 = vpop.xlane.xlu0 %734
      %v736 = vsub.f32 %v732, %v735
      %v737 = vmul.f32 %v736, 1.442695
      %v738 = vpow.pop %v737
      %v739 = vsel %vm712, %v738, 0.0
      %740 = vadd.xlane.f32.xlu0 %v739
      %v741 = vpop.xlane.xlu0 %740
      %v742 = vrcp.pop %v741
      %v743 = vmul.f32 %v741, %v742
      %v744 = vsub.f32 1.0, %v743
      %v745 = vmul.f32 %v742, %v744
      %v746 = vadd.f32 %v742, %v745
      %vm747 = vweird.f32 %v741
      %vm748 = vweird.f32 %v742
      %vm749 = vmor %vm747, %vm748
      %v750 = vsel %vm749, %v742, %v746
      %v751 = vand.u32 2147483647, %v741
      %vm752 = vcmp.eq.f32.partialorder %v751, 8.507059e+37
      %v753 = vand.u32 %v741, 2147483648
      %v754 = vor.u32 1.1754944e-38, %v753
      %v755 = vsel %vm752, %v754, %v750
      %v756 = vmul.f32 %v738, %v755
      %v757 = vpack.c.bf16 %v756, %v756
      %758 = vrot.lane.b32.xlu0 %v709, 64
      %v759 = vpop.permute.xlu0 %758
      %v761 = vsel %vm712, %v757, 0
      %vm763 = vcmask 1043456
      %v765 = vsel %vm763, %v759, 0
      %767 = vmatpush.bf16.msra.mxu0 0
      %768 = vmatpush.bf16.msra.mxu0 0
      %769 = vmatpush.bf16.msra.mxu0 0
      %770 = vmatpush.bf16.msra.mxu0 0
      %771 = vmatpush.bf16.msra.mxu0 0
      %772 = vmatpush.bf16.msra.mxu0 0
      %773 = vmatpush.bf16.msra.mxu0 0
      %774 = vmatpush.bf16.msra.mxu0 %v765
      %775 = vmatmul.bf16.gmra.mxu0 %v761
      %v776 = vpop.f32.mrf.mxu0
      %v777 = vadd.f32 0.0, %v776
      %v778 = vpop.f32.mrf.mxu0
      %779 = vdwg.mxu0
      %780 = vst.msk [vmem:[#allocation2] sm:$0xff] %vm712, %v777
      %781 = vrot.lane.b32.xlu0 %v709, 120
      %v782 = vpop.permute.xlu0 %781
      %783 = vrot.lane.b32.xlu0 %v709, 88
      %v784 = vpop.permute.xlu0 %783
      %v786 = vsel %vm712, %v782, 0
      %v789 = vsel %vm712, %v784, 0
      %791 = vmatpush.bf16.xpose.msra.mxu0 0
      %792 = vmatpush.bf16.xpose.msra.mxu0 0
      %793 = vmatpush.bf16.xpose.msra.mxu0 0
      %794 = vmatpush.bf16.xpose.msra.mxu0 0
      %795 = vmatpush.bf16.xpose.msra.mxu0 0
      %796 = vmatpush.bf16.xpose.msra.mxu0 0
      %797 = vmatpush.bf16.xpose.msra.mxu0 0
      %798 = vmatpush.bf16.xpose.msra.mxu0 %v789
      %799 = vmatmul.bf16.gmra.mxu0 %v786
      %v800 = vpop.f32.mrf.mxu0
      %v801 = vadd.f32 %v705, %v800
      %v802 = vpop.f32.mrf.mxu0
      %803 = vdwg.mxu0
      %v804 = vmul.f32 %v801, 0.35355338
      %v805 = vsel %vm712, %v804, -inf
      %806 = vmax.xlane.f32.xlu0 %v805
      %v807 = vpop.xlane.xlu0 %806
      %v808 = vsub.f32 %v804, %v807
      %v809 = vmul.f32 %v808, 1.442695
      %v810 = vpow.pop %v809
      %v811 = vsel %vm712, %v810, 0.0
      %812 = vadd.xlane.f32.xlu0 %v811
      %v813 = vpop.xlane.xlu0 %812
      %v814 = vrcp.pop %v813
      %v815 = vmul.f32 %v813, %v814
      %v816 = vsub.f32 1.0, %v815
      %v817 = vmul.f32 %v814, %v816
      %v818 = vadd.f32 %v814, %v817
      %vm819 = vweird.f32 %v813
      %vm820 = vweird.f32 %v814
      %vm821 = vmor %vm819, %vm820
      %v822 = vsel %vm821, %v814, %v818
      %v823 = vand.u32 2147483647, %v813
      %vm824 = vcmp.eq.f32.partialorder %v823, 8.507059e+37
      %v825 = vand.u32 %v813, 2147483648
      %v826 = vor.u32 1.1754944e-38, %v825
      %v827 = vsel %vm824, %v826, %v822
      %v828 = vmul.f32 %v810, %v827
      %v829 = vpack.c.bf16 %v828, %v828
      %830 = vrot.lane.b32.xlu0 %v709, 56
      %v831 = vpop.permute.xlu0 %830
      %v833 = vsel %vm712, %v829, 0
      %v836 = vsel %vm763, %v831, 0
      %838 = vmatpush.bf16.msra.mxu0 0
      %839 = vmatpush.bf16.msra.mxu0 0
      %840 = vmatpush.bf16.msra.mxu0 0
      %841 = vmatpush.bf16.msra.mxu0 0
      %842 = vmatpush.bf16.msra.mxu0 0
      %843 = vmatpush.bf16.msra.mxu0 0
      %844 = vmatpush.bf16.msra.mxu0 0
      %845 = vmatpush.bf16.msra.mxu0 %v836
      %846 = vmatmul.bf16.gmra.mxu0 %v833
      %v847 = vpop.f32.mrf.mxu0
      %v848 = vadd.f32 0.0, %v847
      %v849 = vpop.f32.mrf.mxu0
      %850 = vdwg.mxu0
      %852 = vrot.lane.b32.xlu0 %v848, 8
      %v853 = vpop.permute.xlu0 %852
      %vm855 = vcmask 130112
      %856 = vst.msk [vmem:[#allocation2] sm:$0xff] %vm855, %v853
      %857 = vrot.lane.b32.xlu0 %v709, 112
      %v858 = vpop.permute.xlu0 %857
      %859 = vrot.lane.b32.xlu0 %v709, 80
      %v860 = vpop.permute.xlu0 %859
      %v862 = vsel %vm712, %v858, 0
      %v865 = vsel %vm712, %v860, 0
      %867 = vmatpush.bf16.xpose.msra.mxu0 0
      %868 = vmatpush.bf16.xpose.msra.mxu0 0
      %869 = vmatpush.bf16.xpose.msra.mxu0 0
      %870 = vmatpush.bf16.xpose.msra.mxu0 0
      %871 = vmatpush.bf16.xpose.msra.mxu0 0
      %872 = vmatpush.bf16.xpose.msra.mxu0 0
      %873 = vmatpush.bf16.xpose.msra.mxu0 0
      %874 = vmatpush.bf16.xpose.msra.mxu0 %v865
      %875 = vmatmul.bf16.gmra.mxu0 %v862
      %v876 = vpop.f32.mrf.mxu0
      %v877 = vadd.f32 %v705, %v876
      %v878 = vpop.f32.mrf.mxu0
      %879 = vdwg.mxu0
      %v880 = vmul.f32 %v877, 0.35355338
      %v881 = vsel %vm712, %v880, -inf
      %882 = vmax.xlane.f32.xlu0 %v881
      %v883 = vpop.xlane.xlu0 %882
      %v884 = vsub.f32 %v880, %v883
      %v885 = vmul.f32 %v884, 1.442695
      %v886 = vpow.pop %v885
      %v887 = vsel %vm712, %v886, 0.0
      %888 = vadd.xlane.f32.xlu0 %v887
      %v889 = vpop.xlane.xlu0 %888
      %v890 = vrcp.pop %v889
      %v891 = vmul.f32 %v889, %v890
      %v892 = vsub.f32 1.0, %v891
      %v893 = vmul.f32 %v890, %v892
      %v894 = vadd.f32 %v890, %v893
      %vm895 = vweird.f32 %v889
      %vm896 = vweird.f32 %v890
      %vm897 = vmor %vm895, %vm896
      %v898 = vsel %vm897, %v890, %v894
      %v899 = vand.u32 2147483647, %v889
      %vm900 = vcmp.eq.f32.partialorder %v899, 8.507059e+37
      %v901 = vand.u32 %v889, 2147483648
      %v902 = vor.u32 1.1754944e-38, %v901
      %v903 = vsel %vm900, %v902, %v898
      %v904 = vmul.f32 %v886, %v903
      %v905 = vpack.c.bf16 %v904, %v904
      %906 = vrot.lane.b32.xlu0 %v709, 48
      %v907 = vpop.permute.xlu0 %906
      %v909 = vsel %vm712, %v905, 0
      %v912 = vsel %vm763, %v907, 0
      %914 = vmatpush.bf16.msra.mxu0 0
      %915 = vmatpush.bf16.msra.mxu0 0
      %916 = vmatpush.bf16.msra.mxu0 0
      %917 = vmatpush.bf16.msra.mxu0 0
      %918 = vmatpush.bf16.msra.mxu0 0
      %919 = vmatpush.bf16.msra.mxu0 0
      %920 = vmatpush.bf16.msra.mxu0 0
      %921 = vmatpush.bf16.msra.mxu0 %v912
      %922 = vmatmul.bf16.gmra.mxu0 %v909
      %v923 = vpop.f32.mrf.mxu0
      %v924 = vadd.f32 0.0, %v923
      %v925 = vpop.f32.mrf.mxu0
      %926 = vdwg.mxu0
      %928 = vrot.lane.b32.xlu0 %v924, 16
      %v929 = vpop.permute.xlu0 %928
      %vm931 = vcmask 195712
      %932 = vst.msk [vmem:[#allocation2] sm:$0xff] %vm931, %v929
      %933 = vrot.lane.b32.xlu0 %v709, 104
      %v934 = vpop.permute.xlu0 %933
      %935 = vrot.lane.b32.xlu0 %v709, 72
      %v936 = vpop.permute.xlu0 %935
      %v938 = vsel %vm712, %v934, 0
      %v941 = vsel %vm712, %v936, 0
      %943 = vmatpush.bf16.xpose.msra.mxu0 0
      %944 = vmatpush.bf16.xpose.msra.mxu0 0
      %945 = vmatpush.bf16.xpose.msra.mxu0 0
      %946 = vmatpush.bf16.xpose.msra.mxu0 0
      %947 = vmatpush.bf16.xpose.msra.mxu0 0
      %948 = vmatpush.bf16.xpose.msra.mxu0 0
      %949 = vmatpush.bf16.xpose.msra.mxu0 0
      %950 = vmatpush.bf16.xpose.msra.mxu0 %v941
      %951 = vmatmul.bf16.gmra.mxu0 %v938
      %v952 = vpop.f32.mrf.mxu0
      %v953 = vadd.f32 %v705, %v952
      %v954 = vpop.f32.mrf.mxu0
      %955 = vdwg.mxu0
      %v956 = vmul.f32 %v953, 0.35355338
      %v957 = vsel %vm712, %v956, -inf
      %958 = vmax.xlane.f32.xlu0 %v957
      %v959 = vpop.xlane.xlu0 %958
      %v960 = vsub.f32 %v956, %v959
      %v961 = vmul.f32 %v960, 1.442695
      %v962 = vpow.pop %v961
      %v963 = vsel %vm712, %v962, 0.0
      %964 = vadd.xlane.f32.xlu0 %v963
      %v965 = vpop.xlane.xlu0 %964
      %v966 = vrcp.pop %v965
      %v967 = vmul.f32 %v965, %v966
      %v968 = vsub.f32 1.0, %v967
      %v969 = vmul.f32 %v966, %v968
      %v970 = vadd.f32 %v966, %v969
      %vm971 = vweird.f32 %v965
      %vm972 = vweird.f32 %v966
      %vm973 = vmor %vm971, %vm972
      %v974 = vsel %vm973, %v966, %v970
      %v975 = vand.u32 2147483647, %v965
      %vm976 = vcmp.eq.f32.partialorder %v975, 8.507059e+37
      %v977 = vand.u32 %v965, 2147483648
      %v978 = vor.u32 1.1754944e-38, %v977
      %v979 = vsel %vm976, %v978, %v974
      %v980 = vmul.f32 %v962, %v979
      %v981 = vpack.c.bf16 %v980, %v980
      %982 = vrot.lane.b32.xlu0 %v709, 40
      %v983 = vpop.permute.xlu0 %982
      %v985 = vsel %vm712, %v981, 0
      %v988 = vsel %vm763, %v983, 0
      %990 = vmatpush.bf16.msra.mxu0 0
      %991 = vmatpush.bf16.msra.mxu0 0
      %992 = vmatpush.bf16.msra.mxu0 0
      %993 = vmatpush.bf16.msra.mxu0 0
      %994 = vmatpush.bf16.msra.mxu0 0
      %995 = vmatpush.bf16.msra.mxu0 0
      %996 = vmatpush.bf16.msra.mxu0 0
      %997 = vmatpush.bf16.msra.mxu0 %v988
      %998 = vmatmul.bf16.gmra.mxu0 %v985
      %v999 = vpop.f32.mrf.mxu0
      %v1000 = vadd.f32 0.0, %v999
      %v1001 = vpop.f32.mrf.mxu0
      %1002 = vdwg.mxu0
      %1004 = vrot.lane.b32.xlu0 %v1000, 24
      %v1005 = vpop.permute.xlu0 %1004
      %vm1007 = vcmask 261312
      %1008 = vst.msk [vmem:[#allocation2] sm:$0xff] %vm1007, %v1005
      %v1009 = vld [vmem:[#allocation2] sm:$0xff]
      %v1010 = vpack.c.bf16 %v1009, %v1009
      %v1011 = vld [vmem:[%s5] sm:$0xf]
      %v1012 = vld [vmem:[%s5 + $0x4] sm:$0xf]
      %v1013 = vld [vmem:[%s5 + $0x8] sm:$0xf]
      %v1014 = vld [vmem:[%s5 + $0xc] sm:$0xf]
      %v1015 = vld [vmem:[%s6] sm:$0x1]
      %v1017 = vperm.slane %v1015, 0
      %v1023 = vunpack.c.l.b16 %v1011
      %v1024 = vunpack.c.l.b16 %v1012
      %v1025 = vunpack.c.l.b16 %v1013
      %v1026 = vunpack.c.l.b16 %v1014
      %v1027 = vpack.c.b16 %v1024, %v1023
      %v1028 = vpack.c.b16 %v1026, %v1025
      %v1032 = vsel %vm688, %v1010, 0
      %1034 = vmatpush.bf16.msra.mxu0 0
      %1035 = vmatpush.bf16.msra.mxu0 0
      %1036 = vmatpush.bf16.msra.mxu0 0
      %1037 = vmatpush.bf16.msra.mxu0 0
      %1038 = vmatpush.bf16.msra.mxu0 0
      %1039 = vmatpush.bf16.msra.mxu0 0
      %1040 = vmatpush.bf16.msra.mxu0 %v1028
      %1041 = vmatpush.bf16.msra.mxu0 %v1027
      %1042 = vmatmul.bf16.gmra.mxu0 %v1032
      %v1043 = vpop.f32.mrf.mxu0
      %v1044 = vadd.f32 %v1017, %v1043
      %v1045 = vpop.f32.mrf.mxu0
      %1046 = vdwg.mxu0
      %v1047 = vunpack.c.l.bf16 %v670
      %v1048 = vadd.f32 %v1044, %v1047
      %v1049 = vld [vmem:[%s7] sm:$0x1]
      %v1050 = vld [vmem:[%s8] sm:$0x1]
      %v1051 = vsel %vm688, %v1048, 0.0
      %1052 = vadd.xlane.f32.xlu0 %v1051
      %v1053 = vpop.xlane.xlu0 %1052
      %v1054 = vrcp.pop 32.0
      %v1055 = vmul.f32 32.0, %v1054
      %v1056 = vsub.f32 1.0, %v1055
      %v1057 = vmul.f32 %v1054, %v1056
      %v1058 = vadd.f32 %v1054, %v1057
      %vm1059 = vweird.f32 %v1054
      %v1060 = vsel %vm1059, %v1054, %v1058
      %v1061 = vmul.f32 %v1053, %v1060
      %v1062 = vsub.f32 %v1048, %v1061
      %v1063 = vmul.f32 %v1062, %v1062
      %v1064 = vsel %vm688, %v1063, 0.0
      %1065 = vadd.xlane.f32.xlu0 %v1064
      %v1066 = vpop.xlane.xlu0 %1065
      %v1067 = vmul.f32 %v1066, %v1060
      %v1068 = vadd.f32 %v1067, 1e-05
      %v1069 = vrsqrt.pop %v1068
      %v1070 = vmul.f32 %v1069, %v1068
      %v1071 = vmul.f32 %v1070, %v1069
      %v1072 = vmul.f32 0.5, %v1071
      %v1073 = vsub.f32 1.5, %v1072
      %v1074 = vmul.f32 %v1069, %v1073
      %vm1075 = vweird.f32 %v1068
      %vm1076 = vweird.f32 %v1069
      %vm1077 = vmor %vm1075, %vm1076
      %v1078 = vsel %vm1077, %v1069, %v1074
      %v1079 = vmul.f32 %v1062, %v1078
      %v1081 = vperm.slane %v1049, 0
      %v1083 = vmul.f32 %v1079, %v1081
      %v1085 = vperm.slane %v1050, 0
      %v1087 = vadd.f32 %v1083, %v1085
      %v1088 = vpack.c.bf16 %v1087, %v1087
      %v1089 = vld [vmem:[%s9] sm:$0xf]
      %v1090 = vld [vmem:[%s9 + $0x4] sm:$0xf]
      %v1091 = vld [vmem:[%s9 + $0x8] sm:$0xf]
      %v1092 = vld [vmem:[%s9 + $0xc] sm:$0xf]
      %v1097 = vunpack.c.l.b16 %v1089
      %v1098 = vunpack.c.l.b16 %v1090
      %v1099 = vunpack.c.l.b16 %v1091
      %v1100 = vunpack.c.l.b16 %v1092
      %v1101 = vpack.c.b16 %v1098, %v1097
      %v1102 = vpack.c.b16 %v1100, %v1099
      %v1106 = vsel %vm688, %v1088, 0
      %1108 = vmatpush.bf16.msra.mxu0 0
      %1109 = vmatpush.bf16.msra.mxu0 0
      %1110 = vmatpush.bf16.msra.mxu0 0
      %1111 = vmatpush.bf16.msra.mxu0 0
      %1112 = vmatpush.bf16.msra.mxu0 0
      %1113 = vmatpush.bf16.msra.mxu0 0
      %1114 = vmatpush.bf16.msra.mxu0 %v1102
      %1115 = vmatpush.bf16.msra.mxu0 %v1101
      %1116 = vmatmul.bf16.gmra.mxu0 %v1106
      %v1117 = vpop.f32.mrf.mxu0
      %v1118 = vadd.f32 0.0, %v1117
      %v1119 = vpop.f32.mrf.mxu0
      %1120 = vdwg.mxu0
      %v1121 = vld [vmem:[%s10] sm:$0xf]
      %v1122 = vld [vmem:[%s10 + $0x4] sm:$0xf]
      %v1123 = vld [vmem:[%s10 + $0x8] sm:$0xf]
      %v1124 = vld [vmem:[%s10 + $0xc] sm:$0xf]
      %v1129 = vunpack.c.l.b16 %v1121
      %v1130 = vunpack.c.l.b16 %v1122
      %v1131 = vunpack.c.l.b16 %v1123
      %v1132 = vunpack.c.l.b16 %v1124
      %v1133 = vpack.c.b16 %v1130, %v1129
      %v1134 = vpack.c.b16 %v1132, %v1131
      %v1138 = vsel %vm688, %v671, 0
      %1140 = vmatpush.bf16.msra.mxu0 0
      %1141 = vmatpush.bf16.msra.mxu0 0
      %1142 = vmatpush.bf16.msra.mxu0 0
      %1143 = vmatpush.bf16.msra.mxu0 0
      %1144 = vmatpush.bf16.msra.mxu0 0
      %1145 = vmatpush.bf16.msra.mxu0 0
      %1146 = vmatpush.bf16.msra.mxu0 %v1134
      %1147 = vmatpush.bf16.msra.mxu0 %v1133
      %1148 = vmatmul.bf16.gmra.mxu0 %v1138
      %v1149 = vpop.f32.mrf.mxu0
      %v1150 = vadd.f32 0.0, %v1149
      %v1151 = vpop.f32.mrf.mxu0
      %1152 = vdwg.mxu0
      %v1153 = vld [vmem:[%s3] sm:$0xff]
      %v1154 = vpack.c.bf16 %v1118, %v1118
      %v1155 = vpack.c.bf16 %v1150, %v1150
      %v1157 = vsel %vm712, %v1154, 0
      %v1160 = vsel %vm712, %v1155, 0
      %1162 = vmatpush.bf16.xpose.msra.mxu0 0
      %1163 = vmatpush.bf16.xpose.msra.mxu0 0
      %1164 = vmatpush.bf16.xpose.msra.mxu0 0
      %1165 = vmatpush.bf16.xpose.msra.mxu0 0
      %1166 = vmatpush.bf16.xpose.msra.mxu0 0
      %1167 = vmatpush.bf16.xpose.msra.mxu0 0
      %1168 = vmatpush.bf16.xpose.msra.mxu0 0
      %1169 = vmatpush.bf16.xpose.msra.mxu0 %v1160
      %1170 = vmatmul.bf16.gmra.mxu0 %v1157
      %v1171 = vpop.f32.mrf.mxu0
      %v1172 = vadd.f32 %v1153, %v1171
      %v1173 = vpop.f32.mrf.mxu0
      %1174 = vdwg.mxu0
      %v1175 = vmul.f32 %v1172, 0.35355338
      %v1176 = vsel %vm712, %v1175, -inf
      %1177 = vmax.xlane.f32.xlu0 %v1176
      %v1178 = vpop.xlane.xlu0 %1177
      %v1179 = vsub.f32 %v1175, %v1178
      %v1180 = vmul.f32 %v1179, 1.442695
      %v1181 = vpow.pop %v1180
      %v1182 = vsel %vm712, %v1181, 0.0
      %1183 = vadd.xlane.f32.xlu0 %v1182
      %v1184 = vpop.xlane.xlu0 %1183
      %v1185 = vrcp.pop %v1184
      %v1186 = vmul.f32 %v1184, %v1185
      %v1187 = vsub.f32 1.0, %v1186
      %v1188 = vmul.f32 %v1185, %v1187
      %v1189 = vadd.f32 %v1185, %v1188
      %vm1190 = vweird.f32 %v1184
      %vm1191 = vweird.f32 %v1185
      %vm1192 = vmor %vm1190, %vm1191
      %v1193 = vsel %vm1192, %v1185, %v1189
      %v1194 = vand.u32 2147483647, %v1184
      %vm1195 = vcmp.eq.f32.partialorder %v1194, 8.507059e+37
      %v1196 = vand.u32 %v1184, 2147483648
      %v1197 = vor.u32 1.1754944e-38, %v1196
      %v1198 = vsel %vm1195, %v1197, %v1193
      %v1199 = vmul.f32 %v1181, %v1198
      %v1200 = vpack.c.bf16 %v1199, %v1199
      %v1202 = vunpack.c.l.b16 %v1155
      %v1203 = vpack.c.b16 %v1202, %v1202
      %1204 = vrot.lane.b32.xlu0 %v1203, 96
      %v1205 = vpop.permute.xlu0 %1204
      %v1207 = vsel %vm712, %v1200, 0
      %v1210 = vsel %vm763, %v1205, 0
      %1212 = vmatpush.bf16.msra.mxu0 0
      %1213 = vmatpush.bf16.msra.mxu0 0
      %1214 = vmatpush.bf16.msra.mxu0 0
      %1215 = vmatpush.bf16.msra.mxu0 0
      %1216 = vmatpush.bf16.msra.mxu0 0
      %1217 = vmatpush.bf16.msra.mxu0 0
      %1218 = vmatpush.bf16.msra.mxu0 0
      %1219 = vmatpush.bf16.msra.mxu0 %v1210
      %1220 = vmatmul.bf16.gmra.mxu0 %v1207
      %v1221 = vpop.f32.mrf.mxu0
      %v1222 = vadd.f32 0.0, %v1221
      %v1223 = vpop.f32.mrf.mxu0
      %1224 = vdwg.mxu0
      %1225 = vst.msk [vmem:[#allocation2] sm:$0xff] %vm712, %v1222
      %v1227 = vunpack.c.l.b16 %v1154
      %v1228 = vpack.c.b16 %v1227, %v1227
      %1229 = vrot.lane.b32.xlu0 %v1228, 120
      %v1230 = vpop.permute.xlu0 %1229
      %1231 = vrot.lane.b32.xlu0 %v1203, 120
      %v1232 = vpop.permute.xlu0 %1231
      %v1234 = vsel %vm712, %v1230, 0
      %v1237 = vsel %vm712, %v1232, 0
      %1239 = vmatpush.bf16.xpose.msra.mxu0 0
      %1240 = vmatpush.bf16.xpose.msra.mxu0 0
      %1241 = vmatpush.bf16.xpose.msra.mxu0 0
      %1242 = vmatpush.bf16.xpose.msra.mxu0 0
      %1243 = vmatpush.bf16.xpose.msra.mxu0 0
      %1244 = vmatpush.bf16.xpose.msra.mxu0 0
      %1245 = vmatpush.bf16.xpose.msra.mxu0 0
      %1246 = vmatpush.bf16.xpose.msra.mxu0 %v1237
      %1247 = vmatmul.bf16.gmra.mxu0 %v1234
      %v1248 = vpop.f32.mrf.mxu0
      %v1249 = vadd.f32 %v1153, %v1248
      %v1250 = vpop.f32.mrf.mxu0
      %1251 = vdwg.mxu0
      %v1252 = vmul.f32 %v1249, 0.35355338
      %v1253 = vsel %vm712, %v1252, -inf
      %1254 = vmax.xlane.f32.xlu0 %v1253
      %v1255 = vpop.xlane.xlu0 %1254
      %v1256 = vsub.f32 %v1252, %v1255
      %v1257 = vmul.f32 %v1256, 1.442695
      %v1258 = vpow.pop %v1257
      %v1259 = vsel %vm712, %v1258, 0.0
      %1260 = vadd.xlane.f32.xlu0 %v1259
      %v1261 = vpop.xlane.xlu0 %1260
      %v1262 = vrcp.pop %v1261
      %v1263 = vmul.f32 %v1261, %v1262
      %v1264 = vsub.f32 1.0, %v1263
      %v1265 = vmul.f32 %v1262, %v1264
      %v1266 = vadd.f32 %v1262, %v1265
      %vm1267 = vweird.f32 %v1261
      %vm1268 = vweird.f32 %v1262
      %vm1269 = vmor %vm1267, %vm1268
      %v1270 = vsel %vm1269, %v1262, %v1266
      %v1271 = vand.u32 2147483647, %v1261
      %vm1272 = vcmp.eq.f32.partialorder %v1271, 8.507059e+37
      %v1273 = vand.u32 %v1261, 2147483648
      %v1274 = vor.u32 1.1754944e-38, %v1273
      %v1275 = vsel %vm1272, %v1274, %v1270
      %v1276 = vmul.f32 %v1258, %v1275
      %v1277 = vpack.c.bf16 %v1276, %v1276
      %1278 = vrot.lane.b32.xlu0 %v1203, 88
      %v1279 = vpop.permute.xlu0 %1278
      %v1281 = vsel %vm712, %v1277, 0
      %v1284 = vsel %vm763, %v1279, 0
      %1286 = vmatpush.bf16.msra.mxu0 0
      %1287 = vmatpush.bf16.msra.mxu0 0
      %1288 = vmatpush.bf16.msra.mxu0 0
      %1289 = vmatpush.bf16.msra.mxu0 0
      %1290 = vmatpush.bf16.msra.mxu0 0
      %1291 = vmatpush.bf16.msra.mxu0 0
      %1292 = vmatpush.bf16.msra.mxu0 0
      %1293 = vmatpush.bf16.msra.mxu0 %v1284
      %1294 = vmatmul.bf16.gmra.mxu0 %v1281
      %v1295 = vpop.f32.mrf.mxu0
      %v1296 = vadd.f32 0.0, %v1295
      %v1297 = vpop.f32.mrf.mxu0
      %1298 = vdwg.mxu0
      %1300 = vrot.lane.b32.xlu0 %v1296, 8
      %v1301 = vpop.permute.xlu0 %1300
      %1303 = vst.msk [vmem:[#allocation2] sm:$0xff] %vm855, %v1301
      %1304 = vrot.lane.b32.xlu0 %v1228, 112
      %v1305 = vpop.permute.xlu0 %1304
      %1306 = vrot.lane.b32.xlu0 %v1203, 112
      %v1307 = vpop.permute.xlu0 %1306
      %v1309 = vsel %vm712, %v1305, 0
      %v1312 = vsel %vm712, %v1307, 0
      %1314 = vmatpush.bf16.xpose.msra.mxu0 0
      %1315 = vmatpush.bf16.xpose.msra.mxu0 0
      %1316 = vmatpush.bf16.xpose.msra.mxu0 0
      %1317 = vmatpush.bf16.xpose.msra.mxu0 0
      %1318 = vmatpush.bf16.xpose.msra.mxu0 0
      %1319 = vmatpush.bf16.xpose.msra.mxu0 0
      %1320 = vmatpush.bf16.xpose.msra.mxu0 0
      %1321 = vmatpush.bf16.xpose.msra.mxu0 %v1312
      %1322 = vmatmul.bf16.gmra.mxu0 %v1309
      %v1323 = vpop.f32.mrf.mxu0
      %v1324 = vadd.f32 %v1153, %v1323
      %v1325 = vpop.f32.mrf.mxu0
      %1326 = vdwg.mxu0
      %v1327 = vmul.f32 %v1324, 0.35355338
      %v1328 = vsel %vm712, %v1327, -inf
      %1329 = vmax.xlane.f32.xlu0 %v1328
      %v1330 = vpop.xlane.xlu0 %1329
      %v1331 = vsub.f32 %v1327, %v1330
      %v1332 = vmul.f32 %v1331, 1.442695
      %v1333 = vpow.pop %v1332
      %v1334 = vsel %vm712, %v1333, 0.0
      %1335 = vadd.xlane.f32.xlu0 %v1334
      %v1336 = vpop.xlane.xlu0 %1335
      %v1337 = vrcp.pop %v1336
      %v1338 = vmul.f32 %v1336, %v1337
      %v1339 = vsub.f32 1.0, %v1338
      %v1340 = vmul.f32 %v1337, %v1339
      %v1341 = vadd.f32 %v1337, %v1340
      %vm1342 = vweird.f32 %v1336
      %vm1343 = vweird.f32 %v1337
      %vm1344 = vmor %vm1342, %vm1343
      %v1345 = vsel %vm1344, %v1337, %v1341
      %v1346 = vand.u32 2147483647, %v1336
      %vm1347 = vcmp.eq.f32.partialorder %v1346, 8.507059e+37
      %v1348 = vand.u32 %v1336, 2147483648
      %v1349 = vor.u32 1.1754944e-38, %v1348
      %v1350 = vsel %vm1347, %v1349, %v1345
      %v1351 = vmul.f32 %v1333, %v1350
      %v1352 = vpack.c.bf16 %v1351, %v1351
      %1353 = vrot.lane.b32.xlu0 %v1203, 80
      %v1354 = vpop.permute.xlu0 %1353
      %v1356 = vsel %vm712, %v1352, 0
      %v1359 = vsel %vm763, %v1354, 0
      %1361 = vmatpush.bf16.msra.mxu0 0
      %1362 = vmatpush.bf16.msra.mxu0 0
      %1363 = vmatpush.bf16.msra.mxu0 0
      %1364 = vmatpush.bf16.msra.mxu0 0
      %1365 = vmatpush.bf16.msra.mxu0 0
      %1366 = vmatpush.bf16.msra.mxu0 0
      %1367 = vmatpush.bf16.msra.mxu0 0
      %1368 = vmatpush.bf16.msra.mxu0 %v1359
      %1369 = vmatmul.bf16.gmra.mxu0 %v1356
      %v1370 = vpop.f32.mrf.mxu0
      %v1371 = vadd.f32 0.0, %v1370
      %v1372 = vpop.f32.mrf.mxu0
      %1373 = vdwg.mxu0
      %1375 = vrot.lane.b32.xlu0 %v1371, 16
      %v1376 = vpop.permute.xlu0 %1375
      %1378 = vst.msk [vmem:[#allocation2] sm:$0xff] %vm931, %v1376
      %1379 = vrot.lane.b32.xlu0 %v1228, 104
      %v1380 = vpop.permute.xlu0 %1379
      %1381 = vrot.lane.b32.xlu0 %v1203, 104
      %v1382 = vpop.permute.xlu0 %1381
      %v1384 = vsel %vm712, %v1380, 0
      %v1387 = vsel %vm712, %v1382, 0
      %1389 = vmatpush.bf16.xpose.msra.mxu0 0
      %1390 = vmatpush.bf16.xpose.msra.mxu0 0
      %1391 = vmatpush.bf16.xpose.msra.mxu0 0
      %1392 = vmatpush.bf16.xpose.msra.mxu0 0
      %1393 = vmatpush.bf16.xpose.msra.mxu0 0
      %1394 = vmatpush.bf16.xpose.msra.mxu0 0
      %1395 = vmatpush.bf16.xpose.msra.mxu0 0
      %1396 = vmatpush.bf16.xpose.msra.mxu0 %v1387
      %1397 = vmatmul.bf16.gmra.mxu0 %v1384
      %v1398 = vpop.f32.mrf.mxu0
      %v1399 = vadd.f32 %v1153, %v1398
      %v1400 = vpop.f32.mrf.mxu0
      %1401 = vdwg.mxu0
      %v1402 = vmul.f32 %v1399, 0.35355338
      %v1403 = vsel %vm712, %v1402, -inf
      %1404 = vmax.xlane.f32.xlu0 %v1403
      %v1405 = vpop.xlane.xlu0 %1404
      %v1406 = vsub.f32 %v1402, %v1405
      %v1407 = vmul.f32 %v1406, 1.442695
      %v1408 = vpow.pop %v1407
      %v1409 = vsel %vm712, %v1408, 0.0
      %1410 = vadd.xlane.f32.xlu0 %v1409
      %v1411 = vpop.xlane.xlu0 %1410
      %v1412 = vrcp.pop %v1411
      %v1413 = vmul.f32 %v1411, %v1412
      %v1414 = vsub.f32 1.0, %v1413
      %v1415 = vmul.f32 %v1412, %v1414
      %v1416 = vadd.f32 %v1412, %v1415
      %vm1417 = vweird.f32 %v1411
      %vm1418 = vweird.f32 %v1412
      %vm1419 = vmor %vm1417, %vm1418
      %v1420 = vsel %vm1419, %v1412, %v1416
      %v1421 = vand.u32 2147483647, %v1411
      %vm1422 = vcmp.eq.f32.partialorder %v1421, 8.507059e+37
      %v1423 = vand.u32 %v1411, 2147483648
      %v1424 = vor.u32 1.1754944e-38, %v1423
      %v1425 = vsel %vm1422, %v1424, %v1420
      %v1426 = vmul.f32 %v1408, %v1425
      %v1427 = vpack.c.bf16 %v1426, %v1426
      %1428 = vrot.lane.b32.xlu0 %v1203, 72
      %v1429 = vpop.permute.xlu0 %1428
      %v1431 = vsel %vm712, %v1427, 0
      %v1434 = vsel %vm763, %v1429, 0
      %1436 = vmatpush.bf16.msra.mxu0 0
      %1437 = vmatpush.bf16.msra.mxu0 0
      %1438 = vmatpush.bf16.msra.mxu0 0
      %1439 = vmatpush.bf16.msra.mxu0 0
      %1440 = vmatpush.bf16.msra.mxu0 0
      %1441 = vmatpush.bf16.msra.mxu0 0
      %1442 = vmatpush.bf16.msra.mxu0 0
      %1443 = vmatpush.bf16.msra.mxu0 %v1434
      %1444 = vmatmul.bf16.gmra.mxu0 %v1431
      %v1445 = vpop.f32.mrf.mxu0
      %v1446 = vadd.f32 0.0, %v1445
      %v1447 = vpop.f32.mrf.mxu0
      %1448 = vdwg.mxu0
      %1450 = vrot.lane.b32.xlu0 %v1446, 24
      %v1451 = vpop.permute.xlu0 %1450
      %1453 = vst.msk [vmem:[#allocation2] sm:$0xff] %vm1007, %v1451
      %v1454 = vld [vmem:[#allocation2] sm:$0xff]
      %v1455 = vpack.c.bf16 %v1454, %v1454
      %v1456 = vld [vmem:[%s11] sm:$0xf]
      %v1457 = vld [vmem:[%s11 + $0x4] sm:$0xf]
      %v1458 = vld [vmem:[%s11 + $0x8] sm:$0xf]
      %v1459 = vld [vmem:[%s11 + $0xc] sm:$0xf]
      %v1460 = vld [vmem:[%s12] sm:$0x1]
      %v1462 = vperm.slane %v1460, 0
      %v1468 = vunpack.c.l.b16 %v1456
      %v1469 = vunpack.c.l.b16 %v1457
      %v1470 = vunpack.c.l.b16 %v1458
      %v1471 = vunpack.c.l.b16 %v1459
      %v1472 = vpack.c.b16 %v1469, %v1468
      %v1473 = vpack.c.b16 %v1471, %v1470
      %v1477 = vsel %vm688, %v1455, 0
      %1479 = vmatpush.bf16.msra.mxu0 0
      %1480 = vmatpush.bf16.msra.mxu0 0
      %1481 = vmatpush.bf16.msra.mxu0 0
      %1482 = vmatpush.bf16.msra.mxu0 0
      %1483 = vmatpush.bf16.msra.mxu0 0
      %1484 = vmatpush.bf16.msra.mxu0 0
      %1485 = vmatpush.bf16.msra.mxu0 %v1473
      %1486 = vmatpush.bf16.msra.mxu0 %v1472
      %1487 = vmatmul.bf16.gmra.mxu0 %v1477
      %v1488 = vpop.f32.mrf.mxu0
      %v1489 = vadd.f32 %v1462, %v1488
      %v1490 = vpop.f32.mrf.mxu0
      %1491 = vdwg.mxu0
      %v1492 = vadd.f32 %v1489, %v1087
      %v1493 = vld [vmem:[%s13] sm:$0x1]
      %v1494 = vld [vmem:[%s14] sm:$0x1]
      %v1495 = vsel %vm688, %v1492, 0.0
      %1496 = vadd.xlane.f32.xlu0 %v1495
      %v1497 = vpop.xlane.xlu0 %1496
      %v1498 = vmul.f32 %v1497, %v1060
      %v1499 = vsub.f32 %v1492, %v1498
      %v1500 = vmul.f32 %v1499, %v1499
      %v1501 = vsel %vm688, %v1500, 0.0
      %1502 = vadd.xlane.f32.xlu0 %v1501
      %v1503 = vpop.xlane.xlu0 %1502
      %v1504 = vmul.f32 %v1503, %v1060
      %v1505 = vadd.f32 %v1504, 1e-05
      %v1506 = vrsqrt.pop %v1505
      %v1507 = vmul.f32 %v1506, %v1505
      %v1508 = vmul.f32 %v1507, %v1506
      %v1509 = vmul.f32 0.5, %v1508
      %v1510 = vsub.f32 1.5, %v1509
      %v1511 = vmul.f32 %v1506, %v1510
      %vm1512 = vweird.f32 %v1505
      %vm1513 = vweird.f32 %v1506
      %vm1514 = vmor %vm1512, %vm1513
      %v1515 = vsel %vm1514, %v1506, %v1511
      %v1516 = vmul.f32 %v1499, %v1515
      %v1518 = vperm.slane %v1493, 0
      %v1520 = vmul.f32 %v1516, %v1518
      %v1522 = vperm.slane %v1494, 0
      %v1524 = vadd.f32 %v1520, %v1522
      %v1525 = vpack.c.bf16 %v1524, %v1524
      %v1526 = vld [vmem:[%s15] sm:$0xf]
      %v1527 = vld [vmem:[%s15 + $0x4] sm:$0xf]
      %v1528 = vld [vmem:[%s15 + $0x8] sm:$0xf]
      %v1529 = vld [vmem:[%s15 + $0xc] sm:$0xf]
      %v1530 = vld [vmem:[%s16] sm:$0x1]
      %v1532 = vperm.slane %v1530, 0
      %v1538 = vunpack.c.l.b16 %v1526
      %v1539 = vunpack.c.l.b16 %v1527
      %v1540 = vunpack.c.l.b16 %v1528
      %v1541 = vunpack.c.l.b16 %v1529
      %v1542 = vpack.c.b16 %v1539, %v1538
      %v1543 = vpack.c.b16 %v1541, %v1540
      %v1547 = vsel %vm688, %v1525, 0
      %1549 = vmatpush.bf16.msra.mxu0 0
      %1550 = vmatpush.bf16.msra.mxu0 0
      %1551 = vmatpush.bf16.msra.mxu0 0
      %1552 = vmatpush.bf16.msra.mxu0 0
      %1553 = vmatpush.bf16.msra.mxu0 0
      %1554 = vmatpush.bf16.msra.mxu0 0
      %1555 = vmatpush.bf16.msra.mxu0 %v1543
      %1556 = vmatpush.bf16.msra.mxu0 %v1542
      %1557 = vmatmul.bf16.gmra.mxu0 %v1547
      %v1558 = vpop.f32.mrf.mxu0
      %v1559 = vadd.f32 %v1532, %v1558
      %v1560 = vpop.f32.mrf.mxu0
      %1561 = vdwg.mxu0
      %v1562 = vmax.f32 %v1559, 0.0
      %v1563 = vpack.c.bf16 %v1562, %v1562
      %v1564 = vld [vmem:[%s17] sm:$0xf]
      %v1565 = vld [vmem:[%s17 + $0x4] sm:$0xf]
      %v1566 = vld [vmem:[%s17 + $0x8] sm:$0xf]
      %v1567 = vld [vmem:[%s17 + $0xc] sm:$0xf]
      %v1568 = vld [vmem:[%s17 + $0x10] sm:$0xf]
      %v1569 = vld [vmem:[%s17 + $0x14] sm:$0xf]
      %v1570 = vld [vmem:[%s17 + $0x18] sm:$0xf]
      %v1571 = vld [vmem:[%s17 + $0x1c] sm:$0xf]
      %v1572 = vld [vmem:[%s18] sm:$0x1]
      %v1574 = vperm.slane %v1572, 0
      %v1584 = vunpack.c.l.b16 %v1564
      %v1585 = vunpack.c.l.b16 %v1565
      %v1586 = vunpack.c.l.b16 %v1566
      %v1587 = vunpack.c.l.b16 %v1567
      %v1588 = vunpack.c.l.b16 %v1568
      %v1589 = vunpack.c.l.b16 %v1569
      %v1590 = vunpack.c.l.b16 %v1570
      %v1591 = vunpack.c.l.b16 %v1571
      %v1592 = vpack.c.b16 %v1585, %v1584
      %v1593 = vpack.c.b16 %v1587, %v1586
      %v1594 = vpack.c.b16 %v1589, %v1588
      %v1595 = vpack.c.b16 %v1591, %v1590
      %vm1600 = vcmask 523264
      %v1602 = vsel %vm1600, %v1563, 0
      %1604 = vmatpush.bf16.msra.mxu0 0
      %1605 = vmatpush.bf16.msra.mxu0 0
      %1606 = vmatpush.bf16.msra.mxu0 0
      %1607 = vmatpush.bf16.msra.mxu0 0
      %1608 = vmatpush.bf16.msra.mxu0 %v1595
      %1609 = vmatpush.bf16.msra.mxu0 %v1594
      %1610 = vmatpush.bf16.msra.mxu0 %v1593
      %1611 = vmatpush.bf16.msra.mxu0 %v1592
      %1612 = vmatmul.bf16.gmra.mxu0 %v1602
      %v1613 = vpop.f32.mrf.mxu0
      %v1614 = vadd.f32 %v1574, %v1613
      %v1615 = vpop.f32.mrf.mxu0
      %1616 = vdwg.mxu0
      %v1617 = vadd.f32 %v1614, %v1524
      %v1618 = vld [vmem:[%s19] sm:$0x1]
      %v1619 = vld [vmem:[%s20] sm:$0x1]
      %v1620 = vsel %vm688, %v1617, 0.0
      %1621 = vadd.xlane.f32.xlu0 %v1620
      %v1622 = vpop.xlane.xlu0 %1621
      %v1623 = vmul.f32 %v1622, %v1060
      %v1624 = vsub.f32 %v1617, %v1623
      %v1625 = vmul.f32 %v1624, %v1624
      %v1626 = vsel %vm688, %v1625, 0.0
      %1627 = vadd.xlane.f32.xlu0 %v1626
      %v1628 = vpop.xlane.xlu0 %1627
      %v1629 = vmul.f32 %v1628, %v1060
      %v1630 = vadd.f32 %v1629, 1e-05
      %v1631 = vrsqrt.pop %v1630
      %v1632 = vmul.f32 %v1631, %v1630
      %v1633 = vmul.f32 %v1632, %v1631
      %v1634 = vmul.f32 0.5, %v1633
      %v1635 = vsub.f32 1.5, %v1634
      %v1636 = vmul.f32 %v1631, %v1635
      %vm1637 = vweird.f32 %v1630
      %vm1638 = vweird.f32 %v1631
      %vm1639 = vmor %vm1637, %vm1638
      %v1640 = vsel %vm1639, %v1631, %v1636
      %v1641 = vmul.f32 %v1624, %v1640
      %v1643 = vperm.slane %v1618, 0
      %v1645 = vmul.f32 %v1641, %v1643
      %v1647 = vperm.slane %v1619, 0
      %v1649 = vadd.f32 %v1645, %v1647
      %v1650 = vpack.c.bf16 %v1649, %v1649
      %vm1651 = vcmask 257024
      %1652 = vst.msk [vmem:[%s668] sm:$0xf] %vm1651, %v1650
      %p1653 = scmp.lt.s32.totalorder %s32, 1
      %s1654 = scalar_select %p1653, %s32, 1
      %s1655 = smul.addr %s1654, 4
      %s1656 = scalar_lea.vmem %s21, %s1655
      // Predicated region
      $region105: #{decoder_forward.3} parent=103 // pred_check
        %p1657 = pneg %p501
      $region106: #{decoder_forward.3} parent=103 // pred_check_branch
        %1659 = sbr.rel (%p1657) target = $region108
      $region107: #{decoder_forward.3} parent=103 // pred_region
        _
      $region108: #{decoder_forward.3} parent=103 // pred_fallthru
        _
    $region104: #{decoder_forward.3} parent=5 // pred_fallthru
      _
    %p1660 = scmp.le.s32.totalorder 2, %s27
    // Predicated region
    $region109: #{decoder_forward.3} parent=5 // pred_check
      %p1661 = pneg %p1660
    $region110: #{decoder_forward.3} parent=5 // pred_check_branch
      %1663 = sbr.rel (%p1661) target = $region112
    $region111: #{decoder_forward.3} parent=5 // pred_region
      %s1664 = ssub.s32 %s27, 2
      // Predicated region
      $region113: #{decoder_forward.3} parent=111 // pred_check
        %p1665 = pneg %p507
      $region114: #{decoder_forward.3} parent=111 // pred_check_branch
        %1667 = sbr.rel (%p1665) target = $region116
      $region115: #{decoder_forward.3} parent=111 // pred_region
        %p1668 = scmp.lt.s32.totalorder %s33, 1
        %s1669 = scalar_select %p1668, %s33, 1
        %s1670 = smul.addr %s1669, 4
        %s1671 = scalar_lea.vmem %s21, %s1670
      $region116: #{decoder_forward.3} parent=111 // pred_fallthru
        _
    $region112: #{decoder_forward.3} parent=5 // pred_fallthru
      _
  $region6: #{decoder_forward.3} parent=0 // loop_footer
    %s31 = sadd.s32 1, %s27
  $region7: #{decoder_forward.3} parent=0 // loop_footer_branch
    %26 = sbr.rel target = $region3
  $region8: #{decoder_forward.3} parent=0 // loop_exit
    _

</llo_original>
